<compile_context>
chip_gen: v5e
topology: v5e:2x2
jax: 0.10.0
libtpu: 0.0.40
codegen_flags: <defaults>
</compile_context>

<pallas_src>
import jax
import jax.numpy as jnp
from jax import lax
from jax.experimental import pallas as pl
from jax.experimental.pallas import tpu as pltpu

# ---------------- problem configuration (mirrors MPPI.__init__ args) --------
HORIZON = 16            # T
NUM_SAMPLES = 128       # K (one lane-vector worth of samples)
DIM_STATE = 3           # S: (x, y, theta) unicycle state
DIM_CONTROL = 2         # C: (v, omega)
DT = 0.1                # dynamics step size
LAMBDA = 1.0            # temperature
SIGMAS = (0.5, 0.3)     # per-control-dim noise std
U_MIN = (-2.0, -1.0)    # dynamics.min_action
U_MAX = (2.0, 1.0)      # dynamics.max_action
GOAL = (5.0, 5.0)       # objective goal position
TERMINAL_WEIGHT = 10.0  # terminal cost scale


# ----------------------- in-kernel prefix-sum helpers ------------------------
def _shift_down(x, s):
    """result[i] = x[i - s] for i >= s, else 0 (along axis 0). Exact f32."""
    n = x.shape[0]
    pad = jnp.zeros((s,) + x.shape[1:], x.dtype)
    return jnp.concatenate([pad, x[:n - s]], axis=0)


def _inclusive_prefix_sum(x):
    """Hillis-Steele inclusive prefix sum along axis 0 (log2(n) shifted adds)."""
    n = x.shape[0]
    s = 1
    while s < n:                       # unrolled at trace time (n static, small)
        x = x + _shift_down(x, s)
        s *= 2
    return x


# --------------------------------- kernel -----------------------------------
def mppi_kernel(state0_ref,      # SMEM (S,)        current state
                mean_ref,        # VMEM (C*T, 1)    mean action seq, c-major rows
                mw_ref,          # VMEM (C*T, 1)    mean @ inv_covariance, c-major
                noise_ref,       # VMEM (C*T, K)    sampled action noise, c-major
                opt_act_ref,     # out  (C*T, 1)    weighted optimal actions
                opt_state_ref,   # out  (T+1, S)    optimal rollout
                weights_ref):    # out  (1, K)      softmax weights
    CT, K = noise_ref.shape
    T = CT // DIM_CONTROL

    x0 = state0_ref[0]
    y0 = state0_ref[1]
    th0 = state0_ref[2]

    # perturbed actions = mean + noise, clamped per control dim.
    # Packed layout: rows [0, T) are v, rows [T, 2T) are omega.
    pert = noise_ref[...] + mean_ref[...]                        # lane-bcast add
    is_v = lax.broadcasted_iota(jnp.int32, (CT, K), 0) < T
    lo = jnp.where(is_v, U_MIN[0], U_MIN[1])
    hi = jnp.where(is_v, U_MAX[0], U_MAX[1])
    pert = jnp.minimum(jnp.maximum(pert, lo), hi)                # (C*T, K)

    v = pert[:T, :]                                              # (T, K)
    om = pert[T:, :]                                             # (T, K)

    # ---------- batched rollout of all K samples via prefix sums -----------
    dth_cum = _inclusive_prefix_sum(om * DT)                     # (T, K) incl.
    th_t = th0 + _shift_down(dth_cum, 1)                         # theta at t
    dxc = v * jnp.cos(th_t) * DT                                 # one batched
    dyc = v * jnp.sin(th_t) * DT                                 #   cos/sin pass
    dxy_cum = _inclusive_prefix_sum(jnp.concatenate([dxc, dyc], axis=1))  # (T,2K)
    xc, yc = dxy_cum[:, :K], dxy_cum[:, K:]                      # (T, K) each
    x_t = x0 + _shift_down(xc, 1)                                # x at times t
    y_t = y0 + _shift_down(yc, 1)                                # y at times t

    # stage costs (times 0..T-1) as one batched sublane reduction
    ex, ey = x_t - GOAL[0], y_t - GOAL[1]
    stage = jnp.sum(ex * ex + ey * ey, axis=0, keepdims=True)    # (1, K)

    # terminal cost (time T)
    exT = (x0 + xc[T - 1:T, :]) - GOAL[0]
    eyT = (y0 + yc[T - 1:T, :]) - GOAL[1]
    term = TERMINAL_WEIGHT * (exT * exT + eyT * eyT)             # (1, K)

    # action cost: sum_{t,c} (mean @ inv_cov)[t,c] * u[t,c,k]
    a_cost = jnp.sum(mw_ref[...] * pert, axis=0, keepdims=True)  # (1, K)

    costs = stage + term + LAMBDA * a_cost                       # (1, K)

    # softmax(-costs / lambda) over the sample (lane) axis
    z = -costs * (1.0 / LAMBDA)
    z = z - jnp.max(z, axis=1, keepdims=True)
    e = jnp.exp(z)
    w = e * pl.reciprocal(jnp.sum(e, axis=1, keepdims=True), approx=True)
    weights_ref[...] = w                                         # (1, K)

    # ------ weighted optimal action sequence: one batched lane reduce ------
    opt_col = jnp.sum(pert * w, axis=1, keepdims=True)           # (C*T, 1)
    opt_act_ref[...] = opt_col
    opt_v = opt_col[:T, :]                                       # (T, 1)
    opt_om = opt_col[T:, :]                                      # (T, 1)

    # ------- rollout of the optimal action sequence (prefix-sum form) ------
    odth_cum = _inclusive_prefix_sum(opt_om * DT)                # (T, 1)
    oth_t = th0 + _shift_down(odth_cum, 1)
    dxo = opt_v * jnp.cos(oth_t) * DT
    dyo = opt_v * jnp.sin(oth_t) * DT
    oxy_cum = _inclusive_prefix_sum(jnp.concatenate([dxo, dyo], axis=1))  # (T, 2)
    base = jnp.concatenate([jnp.full((1, 1), x0, jnp.float32),
                            jnp.full((1, 1), y0, jnp.float32),
                            jnp.full((1, 1), th0, jnp.float32)], axis=1)  # (1, S)
    tail = jnp.concatenate([x0 + oxy_cum[:, 0:1],
                            y0 + oxy_cum[:, 1:2],
                            th0 + odth_cum], axis=1)             # (T, S)
    opt_state_ref[...] = jnp.concatenate([base, tail], axis=0)   # single store


# -------------------------------- wrapper ------------------------------------
def mppi_forward(state, mean_action_seq, noise_ktc, inv_covariance):
    """state: (S,), mean_action_seq: (T, C), noise_ktc: (K, T, C),
    inv_covariance: (C, C).  Returns (optimal_action_seq (T, C),
    optimal_state_seq (1, T+1, S), weights (K,))."""
    T, C = mean_action_seq.shape
    K = noise_ktc.shape[0]
    S = state.shape[0]

    # pack to c-major rows (row = c*T + t): v block on top, omega block below
    noise_ctk = jnp.transpose(noise_ktc.astype(jnp.float32),
                              (2, 1, 0)).reshape(C * T, K)
    mean_col = mean_action_seq.astype(jnp.float32).T.reshape(C * T, 1)
    mw_col = (mean_action_seq @ inv_covariance).astype(jnp.float32).T.reshape(
        C * T, 1)

    opt_col, opt_state, weights = pl.pallas_call(
        mppi_kernel,
        out_shape=(
            jax.ShapeDtypeStruct((C * T, 1), jnp.float32),   # opt action (c-major)
            jax.ShapeDtypeStruct((T + 1, S), jnp.float32),   # optimal state seq
            jax.ShapeDtypeStruct((1, K), jnp.float32),       # weights
        ),
        in_specs=[
            pl.BlockSpec(memory_space=pltpu.MemorySpace.SMEM),   # state0
            pl.BlockSpec(memory_space=pltpu.MemorySpace.VMEM),   # mean (C*T, 1)
            pl.BlockSpec(memory_space=pltpu.MemorySpace.VMEM),   # mw   (C*T, 1)
            pl.BlockSpec(memory_space=pltpu.MemorySpace.VMEM),   # noise (C*T, K)
        ],
        out_specs=(
            pl.BlockSpec(memory_space=pltpu.MemorySpace.VMEM),
            pl.BlockSpec(memory_space=pltpu.MemorySpace.VMEM),
            pl.BlockSpec(memory_space=pltpu.MemorySpace.VMEM),
        ),
    )(state.astype(jnp.float32), mean_col, mw_col, noise_ctk)

    optimal_action_seq = opt_col.reshape(C, T).T                 # (T, C)
    return optimal_action_seq, opt_state[None], weights[0]


# --------------------------- pure-JAX reference ------------------------------
def mppi_reference(state, mean, noise_ktc, inv_cov):
    K, T, C = noise_ktc.shape
    u_min = jnp.array(U_MIN, jnp.float32)
    u_max = jnp.array(U_MAX, jnp.float32)
    pert = jnp.clip(noise_ktc + mean[None, :, :], u_min, u_max)   # (K, T, C)
    x = jnp.full((K,), state[0])
    y = jnp.full((K,), state[1])
    th = jnp.full((K,), state[2])
    stage = jnp.zeros((K,), jnp.float32)
    for t in range(T):
        stage = stage + (x - GOAL[0]) ** 2 + (y - GOAL[1]) ** 2
        vt, omt = pert[:, t, 0], pert[:, t, 1]
        x = x + vt * jnp.cos(th) * DT
        y = y + vt * jnp.sin(th) * DT
        th = th + omt * DT
    term = TERMINAL_WEIGHT * ((x - GOAL[0]) ** 2 + (y - GOAL[1]) ** 2)
    mw = mean @ inv_cov                                           # (T, C)
    a_cost = jnp.sum(mw[None, :, :] * pert, axis=(1, 2))          # (K,)
    costs = stage + term + LAMBDA * a_cost
    w = jax.nn.softmax(-costs / LAMBDA)
    opt = jnp.sum(w[:, None, None] * pert, axis=0)                # (T, C)
    s = jnp.asarray(state, jnp.float32)
    seq = [s]
    for t in range(T):
        vt, omt = opt[t, 0], opt[t, 1]
        s = jnp.array([s[0] + vt * jnp.cos(s[2]) * DT,
                       s[1] + vt * jnp.sin(s[2]) * DT,
                       s[2] + omt * DT])
        seq.append(s)
    return opt, jnp.stack(seq), w


# ----------------------------------- main ------------------------------------
if __name__ == "__main__":
    key = jax.random.PRNGKey(0)
    sigmas = jnp.array(SIGMAS, jnp.float32)
    inv_cov = jnp.diag(1.0 / (sigmas ** 2)).astype(jnp.float32)

    # deterministic example inputs (non-zero mean exercises the full cost path)
    state = jnp.array([0.0, 0.0, 0.3], jnp.float32)                 # (S,)
    t_idx = jnp.arange(HORIZON, dtype=jnp.float32)
    mean_action_seq = jnp.stack([0.5 + 0.02 * t_idx,
                                 0.1 - 0.01 * t_idx], axis=1)       # (T, C)
    noise_ktc = jax.random.normal(
        key, (NUM_SAMPLES, HORIZON, DIM_CONTROL), jnp.float32) * sigmas  # (K,T,C)

    opt_act, opt_state, weights = mppi_forward(
        state, mean_action_seq, noise_ktc, inv_cov)
    jax.block_until_ready((opt_act, opt_state, weights))

    ref_act, ref_state, ref_w = mppi_reference(
        state, mean_action_seq, noise_ktc, inv_cov)

    assert opt_act.shape == (HORIZON, DIM_CONTROL)
    assert opt_state.shape == (1, HORIZON + 1, DIM_STATE)
    assert weights.shape == (NUM_SAMPLES,)
    assert jnp.allclose(opt_act, ref_act, atol=2e-3, rtol=2e-3)
    assert jnp.allclose(opt_state[0], ref_state, atol=2e-3, rtol=2e-3)
    assert jnp.allclose(weights, ref_w, atol=2e-3, rtol=2e-3)

    print("KERNEL_OK")
</pallas_src>

<mosaic_0001>
module attributes {stable_mosaic.version = 11 : i64} {
  func.func @mppi_kernel(%arg0: memref<3xf32, #tpu.memory_space<smem>>, %arg1: memref<32x1xf32, #tpu.memory_space<vmem>>, %arg2: memref<32x1xf32, #tpu.memory_space<vmem>>, %arg3: memref<32x128xf32, #tpu.memory_space<vmem>>, %arg4: memref<32x1xf32, #tpu.memory_space<vmem>>, %arg5: memref<17x3xf32, #tpu.memory_space<vmem>>, %arg6: memref<1x128xf32, #tpu.memory_space<vmem>>) attributes {dimension_semantics = [], scalar_prefetch = 0 : i64, scratch_operands = 0 : i64, tpu.core_type = #tpu.core_type<tc>} {
    %c0 = arith.constant 0 : index
    %0 = memref.load %arg0[%c0] : memref<3xf32, #tpu.memory_space<smem>>
    %c1 = arith.constant 1 : index
    %1 = memref.load %arg0[%c1] : memref<3xf32, #tpu.memory_space<smem>>
    %c2 = arith.constant 2 : index
    %2 = memref.load %arg0[%c2] : memref<3xf32, #tpu.memory_space<smem>>
    %c0_0 = arith.constant 0 : index
    %c0_1 = arith.constant 0 : index
    %3 = vector.load %arg3[%c0_0, %c0_1] : memref<32x128xf32, #tpu.memory_space<vmem>>, vector<32x128xf32>
    %c0_2 = arith.constant 0 : index
    %c0_3 = arith.constant 0 : index
    %4 = vector.load %arg1[%c0_2, %c0_3] : memref<32x1xf32, #tpu.memory_space<vmem>>, vector<32x1xf32>
    %5 = vector.broadcast %4 : vector<32x1xf32> to vector<32x128xf32>
    %6 = arith.addf %3, %5 : vector<32x128xf32>
    %7 = tpu.iota {dimensions = array<i32: 0>} : vector<32x128xi32>
    %c16_i32 = arith.constant 16 : i32
    %8 = vector.broadcast %c16_i32 : i32 to vector<32x128xi32>
    %9 = arith.cmpi slt, %7, %8 : vector<32x128xi32>
    %cst = arith.constant -2.000000e+00 : f32
    %cst_4 = arith.constant -1.000000e+00 : f32
    %10 = vector.broadcast %cst : f32 to vector<32x128xf32>
    %11 = vector.broadcast %cst_4 : f32 to vector<32x128xf32>
    %12 = arith.select %9, %10, %11 : vector<32x128xi1>, vector<32x128xf32>
    %cst_5 = arith.constant 2.000000e+00 : f32
    %cst_6 = arith.constant 1.000000e+00 : f32
    %13 = vector.broadcast %cst_5 : f32 to vector<32x128xf32>
    %14 = vector.broadcast %cst_6 : f32 to vector<32x128xf32>
    %15 = arith.select %9, %13, %14 : vector<32x128xi1>, vector<32x128xf32>
    %16 = arith.maximumf %6, %12 : vector<32x128xf32>
    %17 = arith.minimumf %16, %15 : vector<32x128xf32>
    %18 = vector.extract_strided_slice %17 {offsets = [0, 0], sizes = [16, 128], strides = [1, 1]} : vector<32x128xf32> to vector<16x128xf32>
    %19 = vector.extract_strided_slice %17 {offsets = [16, 0], sizes = [16, 128], strides = [1, 1]} : vector<32x128xf32> to vector<16x128xf32>
    %cst_7 = arith.constant 1.000000e-01 : f32
    %20 = vector.broadcast %cst_7 : f32 to vector<16x128xf32>
    %21 = arith.mulf %19, %20 : vector<16x128xf32>
    %cst_8 = arith.constant 0.000000e+00 : f32
    %22 = vector.broadcast %cst_8 : f32 to vector<1x128xf32>
    %23 = vector.extract_strided_slice %21 {offsets = [0, 0], sizes = [15, 128], strides = [1, 1]} : vector<16x128xf32> to vector<15x128xf32>
    %24 = tpu.concatenate %22, %23 in 0 : vector<1x128xf32>, vector<15x128xf32> -> vector<16x128xf32>
    %25 = arith.addf %21, %24 : vector<16x128xf32>
    %cst_9 = arith.constant 0.000000e+00 : f32
    %26 = vector.broadcast %cst_9 : f32 to vector<2x128xf32>
    %27 = vector.extract_strided_slice %25 {offsets = [0, 0], sizes = [14, 128], strides = [1, 1]} : vector<16x128xf32> to vector<14x128xf32>
    %28 = tpu.concatenate %26, %27 in 0 : vector<2x128xf32>, vector<14x128xf32> -> vector<16x128xf32>
    %29 = arith.addf %25, %28 : vector<16x128xf32>
    %cst_10 = arith.constant 0.000000e+00 : f32
    %30 = vector.broadcast %cst_10 : f32 to vector<4x128xf32>
    %31 = vector.extract_strided_slice %29 {offsets = [0, 0], sizes = [12, 128], strides = [1, 1]} : vector<16x128xf32> to vector<12x128xf32>
    %32 = tpu.concatenate %30, %31 in 0 : vector<4x128xf32>, vector<12x128xf32> -> vector<16x128xf32>
    %33 = arith.addf %29, %32 : vector<16x128xf32>
    %cst_11 = arith.constant 0.000000e+00 : f32
    %34 = vector.broadcast %cst_11 : f32 to vector<8x128xf32>
    %35 = vector.extract_strided_slice %33 {offsets = [0, 0], sizes = [8, 128], strides = [1, 1]} : vector<16x128xf32> to vector<8x128xf32>
    %36 = tpu.concatenate %34, %35 in 0 : vector<8x128xf32>, vector<8x128xf32> -> vector<16x128xf32>
    %37 = arith.addf %33, %36 : vector<16x128xf32>
    %cst_12 = arith.constant 0.000000e+00 : f32
    %38 = vector.broadcast %cst_12 : f32 to vector<1x128xf32>
    %39 = vector.extract_strided_slice %37 {offsets = [0, 0], sizes = [15, 128], strides = [1, 1]} : vector<16x128xf32> to vector<15x128xf32>
    %40 = tpu.concatenate %38, %39 in 0 : vector<1x128xf32>, vector<15x128xf32> -> vector<16x128xf32>
    %41 = vector.broadcast %2 : f32 to vector<16x128xf32>
    %42 = arith.addf %41, %40 : vector<16x128xf32>
    %43 = math.cos %42 : vector<16x128xf32>
    %44 = arith.mulf %18, %43 : vector<16x128xf32>
    %cst_13 = arith.constant 1.000000e-01 : f32
    %45 = vector.broadcast %cst_13 : f32 to vector<16x128xf32>
    %46 = arith.mulf %44, %45 : vector<16x128xf32>
    %47 = math.sin %42 : vector<16x128xf32>
    %48 = arith.mulf %18, %47 : vector<16x128xf32>
    %cst_14 = arith.constant 1.000000e-01 : f32
    %49 = vector.broadcast %cst_14 : f32 to vector<16x128xf32>
    %50 = arith.mulf %48, %49 : vector<16x128xf32>
    %51 = tpu.concatenate %46, %50 in 1 : vector<16x128xf32>, vector<16x128xf32> -> vector<16x256xf32>
    %cst_15 = arith.constant 0.000000e+00 : f32
    %52 = vector.broadcast %cst_15 : f32 to vector<1x256xf32>
    %53 = vector.extract_strided_slice %51 {offsets = [0, 0], sizes = [15, 256], strides = [1, 1]} : vector<16x256xf32> to vector<15x256xf32>
    %54 = tpu.concatenate %52, %53 in 0 : vector<1x256xf32>, vector<15x256xf32> -> vector<16x256xf32>
    %55 = arith.addf %51, %54 : vector<16x256xf32>
    %cst_16 = arith.constant 0.000000e+00 : f32
    %56 = vector.broadcast %cst_16 : f32 to vector<2x256xf32>
    %57 = vector.extract_strided_slice %55 {offsets = [0, 0], sizes = [14, 256], strides = [1, 1]} : vector<16x256xf32> to vector<14x256xf32>
    %58 = tpu.concatenate %56, %57 in 0 : vector<2x256xf32>, vector<14x256xf32> -> vector<16x256xf32>
    %59 = arith.addf %55, %58 : vector<16x256xf32>
    %cst_17 = arith.constant 0.000000e+00 : f32
    %60 = vector.broadcast %cst_17 : f32 to vector<4x256xf32>
    %61 = vector.extract_strided_slice %59 {offsets = [0, 0], sizes = [12, 256], strides = [1, 1]} : vector<16x256xf32> to vector<12x256xf32>
    %62 = tpu.concatenate %60, %61 in 0 : vector<4x256xf32>, vector<12x256xf32> -> vector<16x256xf32>
    %63 = arith.addf %59, %62 : vector<16x256xf32>
    %cst_18 = arith.constant 0.000000e+00 : f32
    %64 = vector.broadcast %cst_18 : f32 to vector<8x256xf32>
    %65 = vector.extract_strided_slice %63 {offsets = [0, 0], sizes = [8, 256], strides = [1, 1]} : vector<16x256xf32> to vector<8x256xf32>
    %66 = tpu.concatenate %64, %65 in 0 : vector<8x256xf32>, vector<8x256xf32> -> vector<16x256xf32>
    %67 = arith.addf %63, %66 : vector<16x256xf32>
    %68 = vector.extract_strided_slice %67 {offsets = [0, 0], sizes = [16, 128], strides = [1, 1]} : vector<16x256xf32> to vector<16x128xf32>
    %69 = vector.extract_strided_slice %67 {offsets = [0, 128], sizes = [16, 128], strides = [1, 1]} : vector<16x256xf32> to vector<16x128xf32>
    %cst_19 = arith.constant 0.000000e+00 : f32
    %70 = vector.broadcast %cst_19 : f32 to vector<1x128xf32>
    %71 = vector.extract_strided_slice %68 {offsets = [0, 0], sizes = [15, 128], strides = [1, 1]} : vector<16x128xf32> to vector<15x128xf32>
    %72 = tpu.concatenate %70, %71 in 0 : vector<1x128xf32>, vector<15x128xf32> -> vector<16x128xf32>
    %73 = vector.broadcast %0 : f32 to vector<16x128xf32>
    %74 = arith.addf %73, %72 : vector<16x128xf32>
    %cst_20 = arith.constant 0.000000e+00 : f32
    %75 = vector.broadcast %cst_20 : f32 to vector<1x128xf32>
    %76 = vector.extract_strided_slice %69 {offsets = [0, 0], sizes = [15, 128], strides = [1, 1]} : vector<16x128xf32> to vector<15x128xf32>
    %77 = tpu.concatenate %75, %76 in 0 : vector<1x128xf32>, vector<15x128xf32> -> vector<16x128xf32>
    %78 = vector.broadcast %1 : f32 to vector<16x128xf32>
    %79 = arith.addf %78, %77 : vector<16x128xf32>
    %cst_21 = arith.constant 5.000000e+00 : f32
    %80 = vector.broadcast %cst_21 : f32 to vector<16x128xf32>
    %81 = arith.subf %74, %80 : vector<16x128xf32>
    %cst_22 = arith.constant 5.000000e+00 : f32
    %82 = vector.broadcast %cst_22 : f32 to vector<16x128xf32>
    %83 = arith.subf %79, %82 : vector<16x128xf32>
    %84 = arith.mulf %81, %81 : vector<16x128xf32>
    %85 = arith.mulf %83, %83 : vector<16x128xf32>
    %86 = arith.addf %84, %85 : vector<16x128xf32>
    %cst_23 = arith.constant dense<0.000000e+00> : vector<128xf32>
    %87 = vector.multi_reduction <add>, %86, %cst_23 [0] : vector<16x128xf32> to vector<128xf32>
    %88 = vector.shape_cast %87 : vector<128xf32> to vector<1x128xf32>
    %89 = vector.extract_strided_slice %68 {offsets = [15, 0], sizes = [1, 128], strides = [1, 1]} : vector<16x128xf32> to vector<1x128xf32>
    %90 = vector.broadcast %0 : f32 to vector<1x128xf32>
    %91 = arith.addf %90, %89 : vector<1x128xf32>
    %cst_24 = arith.constant 5.000000e+00 : f32
    %92 = vector.broadcast %cst_24 : f32 to vector<1x128xf32>
    %93 = arith.subf %91, %92 : vector<1x128xf32>
    %94 = vector.extract_strided_slice %69 {offsets = [15, 0], sizes = [1, 128], strides = [1, 1]} : vector<16x128xf32> to vector<1x128xf32>
    %95 = vector.broadcast %1 : f32 to vector<1x128xf32>
    %96 = arith.addf %95, %94 : vector<1x128xf32>
    %cst_25 = arith.constant 5.000000e+00 : f32
    %97 = vector.broadcast %cst_25 : f32 to vector<1x128xf32>
    %98 = arith.subf %96, %97 : vector<1x128xf32>
    %99 = arith.mulf %93, %93 : vector<1x128xf32>
    %100 = arith.mulf %98, %98 : vector<1x128xf32>
    %101 = arith.addf %99, %100 : vector<1x128xf32>
    %cst_26 = arith.constant 1.000000e+01 : f32
    %102 = vector.broadcast %cst_26 : f32 to vector<1x128xf32>
    %103 = arith.mulf %102, %101 : vector<1x128xf32>
    %c0_27 = arith.constant 0 : index
    %c0_28 = arith.constant 0 : index
    %104 = vector.load %arg2[%c0_27, %c0_28] : memref<32x1xf32, #tpu.memory_space<vmem>>, vector<32x1xf32>
    %105 = vector.broadcast %104 : vector<32x1xf32> to vector<32x128xf32>
    %106 = arith.mulf %105, %17 : vector<32x128xf32>
    %cst_29 = arith.constant dense<0.000000e+00> : vector<128xf32>
    %107 = vector.multi_reduction <add>, %106, %cst_29 [0] : vector<32x128xf32> to vector<128xf32>
    %108 = vector.shape_cast %107 : vector<128xf32> to vector<1x128xf32>
    %109 = arith.addf %88, %103 : vector<1x128xf32>
    %cst_30 = arith.constant 1.000000e+00 : f32
    %110 = vector.broadcast %cst_30 : f32 to vector<1x128xf32>
    %111 = arith.mulf %110, %108 : vector<1x128xf32>
    %112 = arith.addf %109, %111 : vector<1x128xf32>
    %cst_31 = arith.constant 0.000000e+00 : f32
    %113 = vector.broadcast %cst_31 : f32 to vector<1x128xf32>
    %114 = arith.subf %113, %112 : vector<1x128xf32>
    %cst_32 = arith.constant 1.000000e+00 : f32
    %115 = vector.broadcast %cst_32 : f32 to vector<1x128xf32>
    %116 = arith.mulf %114, %115 : vector<1x128xf32>
    %cst_33 = arith.constant dense<0xFF800000> : vector<1xf32>
    %117 = vector.multi_reduction <maximumf>, %116, %cst_33 [1] : vector<1x128xf32> to vector<1xf32>
    %118 = vector.shape_cast %117 : vector<1xf32> to vector<1x1xf32>
    %119 = vector.broadcast %118 : vector<1x1xf32> to vector<1x128xf32>
    %120 = arith.subf %116, %119 : vector<1x128xf32>
    %121 = math.exp %120 : vector<1x128xf32>
    %cst_34 = arith.constant dense<0.000000e+00> : vector<1xf32>
    %122 = vector.multi_reduction <add>, %121, %cst_34 [1] : vector<1x128xf32> to vector<1xf32>
    %123 = vector.shape_cast %122 : vector<1xf32> to vector<1x1xf32>
    %124 = tpu.reciprocal %123 {approx = true} : vector<1x1xf32> -> vector<1x1xf32>
    %125 = vector.broadcast %124 : vector<1x1xf32> to vector<1x128xf32>
    %126 = arith.mulf %121, %125 : vector<1x128xf32>
    %c0_35 = arith.constant 0 : index
    %c0_36 = arith.constant 0 : index
    %127 = vector.load %arg6[%c0_35, %c0_36] : memref<1x128xf32, #tpu.memory_space<vmem>>, vector<1x128xf32>
    tpu.vector_store %arg6[%c0_35, %c0_36], %126 {strides = array<i32>} : memref<1x128xf32, #tpu.memory_space<vmem>>, vector<1x128xf32>,
    %128 = vector.broadcast %126 : vector<1x128xf32> to vector<32x128xf32>
    %129 = arith.mulf %17, %128 : vector<32x128xf32>
    %cst_37 = arith.constant dense<0.000000e+00> : vector<32xf32>
    %130 = vector.multi_reduction <add>, %129, %cst_37 [1] : vector<32x128xf32> to vector<32xf32>
    %131 = vector.shape_cast %130 : vector<32xf32> to vector<32x1xf32>
    %c0_38 = arith.constant 0 : index
    %c0_39 = arith.constant 0 : index
    %132 = vector.load %arg4[%c0_38, %c0_39] : memref<32x1xf32, #tpu.memory_space<vmem>>, vector<32x1xf32>
    tpu.vector_store %arg4[%c0_38, %c0_39], %131 {strides = array<i32>} : memref<32x1xf32, #tpu.memory_space<vmem>>, vector<32x1xf32>,
    %133 = vector.extract_strided_slice %131 {offsets = [0, 0], sizes = [16, 1], strides = [1, 1]} : vector<32x1xf32> to vector<16x1xf32>
    %134 = vector.extract_strided_slice %131 {offsets = [16, 0], sizes = [16, 1], strides = [1, 1]} : vector<32x1xf32> to vector<16x1xf32>
    %cst_40 = arith.constant 1.000000e-01 : f32
    %135 = vector.broadcast %cst_40 : f32 to vector<16x1xf32>
    %136 = arith.mulf %134, %135 : vector<16x1xf32>
    %cst_41 = arith.constant 0.000000e+00 : f32
    %137 = vector.broadcast %cst_41 : f32 to vector<1x1xf32>
    %138 = vector.extract_strided_slice %136 {offsets = [0, 0], sizes = [15, 1], strides = [1, 1]} : vector<16x1xf32> to vector<15x1xf32>
    %139 = tpu.concatenate %137, %138 in 0 : vector<1x1xf32>, vector<15x1xf32> -> vector<16x1xf32>
    %140 = arith.addf %136, %139 : vector<16x1xf32>
    %cst_42 = arith.constant 0.000000e+00 : f32
    %141 = vector.broadcast %cst_42 : f32 to vector<2x1xf32>
    %142 = vector.extract_strided_slice %140 {offsets = [0, 0], sizes = [14, 1], strides = [1, 1]} : vector<16x1xf32> to vector<14x1xf32>
    %143 = tpu.concatenate %141, %142 in 0 : vector<2x1xf32>, vector<14x1xf32> -> vector<16x1xf32>
    %144 = arith.addf %140, %143 : vector<16x1xf32>
    %cst_43 = arith.constant 0.000000e+00 : f32
    %145 = vector.broadcast %cst_43 : f32 to vector<4x1xf32>
    %146 = vector.extract_strided_slice %144 {offsets = [0, 0], sizes = [12, 1], strides = [1, 1]} : vector<16x1xf32> to vector<12x1xf32>
    %147 = tpu.concatenate %145, %146 in 0 : vector<4x1xf32>, vector<12x1xf32> -> vector<16x1xf32>
    %148 = arith.addf %144, %147 : vector<16x1xf32>
    %cst_44 = arith.constant 0.000000e+00 : f32
    %149 = vector.broadcast %cst_44 : f32 to vector<8x1xf32>
    %150 = vector.extract_strided_slice %148 {offsets = [0, 0], sizes = [8, 1], strides = [1, 1]} : vector<16x1xf32> to vector<8x1xf32>
    %151 = tpu.concatenate %149, %150 in 0 : vector<8x1xf32>, vector<8x1xf32> -> vector<16x1xf32>
    %152 = arith.addf %148, %151 : vector<16x1xf32>
    %cst_45 = arith.constant 0.000000e+00 : f32
    %153 = vector.broadcast %cst_45 : f32 to vector<1x1xf32>
    %154 = vector.extract_strided_slice %152 {offsets = [0, 0], sizes = [15, 1], strides = [1, 1]} : vector<16x1xf32> to vector<15x1xf32>
    %155 = tpu.concatenate %153, %154 in 0 : vector<1x1xf32>, vector<15x1xf32> -> vector<16x1xf32>
    %156 = vector.broadcast %2 : f32 to vector<16x1xf32>
    %157 = arith.addf %156, %155 : vector<16x1xf32>
    %158 = math.cos %157 : vector<16x1xf32>
    %159 = arith.mulf %133, %158 : vector<16x1xf32>
    %cst_46 = arith.constant 1.000000e-01 : f32
    %160 = vector.broadcast %cst_46 : f32 to vector<16x1xf32>
    %161 = arith.mulf %159, %160 : vector<16x1xf32>
    %162 = math.sin %157 : vector<16x1xf32>
    %163 = arith.mulf %133, %162 : vector<16x1xf32>
    %cst_47 = arith.constant 1.000000e-01 : f32
    %164 = vector.broadcast %cst_47 : f32 to vector<16x1xf32>
    %165 = arith.mulf %163, %164 : vector<16x1xf32>
    %166 = tpu.concatenate %161, %165 in 1 : vector<16x1xf32>, vector<16x1xf32> -> vector<16x2xf32>
    %cst_48 = arith.constant 0.000000e+00 : f32
    %167 = vector.broadcast %cst_48 : f32 to vector<1x2xf32>
    %168 = vector.extract_strided_slice %166 {offsets = [0, 0], sizes = [15, 2], strides = [1, 1]} : vector<16x2xf32> to vector<15x2xf32>
    %169 = tpu.concatenate %167, %168 in 0 : vector<1x2xf32>, vector<15x2xf32> -> vector<16x2xf32>
    %170 = arith.addf %166, %169 : vector<16x2xf32>
    %cst_49 = arith.constant 0.000000e+00 : f32
    %171 = vector.broadcast %cst_49 : f32 to vector<2x2xf32>
    %172 = vector.extract_strided_slice %170 {offsets = [0, 0], sizes = [14, 2], strides = [1, 1]} : vector<16x2xf32> to vector<14x2xf32>
    %173 = tpu.concatenate %171, %172 in 0 : vector<2x2xf32>, vector<14x2xf32> -> vector<16x2xf32>
    %174 = arith.addf %170, %173 : vector<16x2xf32>
    %cst_50 = arith.constant 0.000000e+00 : f32
    %175 = vector.broadcast %cst_50 : f32 to vector<4x2xf32>
    %176 = vector.extract_strided_slice %174 {offsets = [0, 0], sizes = [12, 2], strides = [1, 1]} : vector<16x2xf32> to vector<12x2xf32>
    %177 = tpu.concatenate %175, %176 in 0 : vector<4x2xf32>, vector<12x2xf32> -> vector<16x2xf32>
    %178 = arith.addf %174, %177 : vector<16x2xf32>
    %cst_51 = arith.constant 0.000000e+00 : f32
    %179 = vector.broadcast %cst_51 : f32 to vector<8x2xf32>
    %180 = vector.extract_strided_slice %178 {offsets = [0, 0], sizes = [8, 2], strides = [1, 1]} : vector<16x2xf32> to vector<8x2xf32>
    %181 = tpu.concatenate %179, %180 in 0 : vector<8x2xf32>, vector<8x2xf32> -> vector<16x2xf32>
    %182 = arith.addf %178, %181 : vector<16x2xf32>
    %183 = vector.broadcast %0 : f32 to vector<1x1xf32>
    %184 = vector.broadcast %1 : f32 to vector<1x1xf32>
    %185 = vector.broadcast %2 : f32 to vector<1x1xf32>
    %186 = tpu.concatenate %183, %184, %185 in 1 : vector<1x1xf32>, vector<1x1xf32>, vector<1x1xf32> -> vector<1x3xf32>
    %187 = vector.extract_strided_slice %182 {offsets = [0, 0], sizes = [16, 1], strides = [1, 1]} : vector<16x2xf32> to vector<16x1xf32>
    %188 = vector.broadcast %0 : f32 to vector<16x1xf32>
    %189 = arith.addf %188, %187 : vector<16x1xf32>
    %190 = vector.extract_strided_slice %182 {offsets = [0, 1], sizes = [16, 1], strides = [1, 1]} : vector<16x2xf32> to vector<16x1xf32>
    %191 = vector.broadcast %1 : f32 to vector<16x1xf32>
    %192 = arith.addf %191, %190 : vector<16x1xf32>
    %193 = vector.broadcast %2 : f32 to vector<16x1xf32>
    %194 = arith.addf %193, %152 : vector<16x1xf32>
    %195 = tpu.concatenate %189, %192, %194 in 1 : vector<16x1xf32>, vector<16x1xf32>, vector<16x1xf32> -> vector<16x3xf32>
    %196 = tpu.concatenate %186, %195 in 0 : vector<1x3xf32>, vector<16x3xf32> -> vector<17x3xf32>
    %c0_52 = arith.constant 0 : index
    %c0_53 = arith.constant 0 : index
    %197 = vector.load %arg5[%c0_52, %c0_53] : memref<17x3xf32, #tpu.memory_space<vmem>>, vector<17x3xf32>
    tpu.vector_store %arg5[%c0_52, %c0_53], %196 {strides = array<i32>} : memref<17x3xf32, #tpu.memory_space<vmem>>, vector<17x3xf32>,
    return
  }
}

</mosaic_0001>

<llo_original>
// kernel: tpu_custom_call.1
$region0: #{tpu_custom_call.1}
  #allocation0 [shape = 'u32[]', space=smem, size = 0x4, offset = 0x4, fixed_abs, tag = 'smem constant byte address 0x4 - core index']
  #allocation1 [shape = 'u32[72,128]{1,0:T(1,128)}', space=vmem, size = 0x9000, scoped, tag = 'internal scratch']
  %s0 = inlined_call_operand.vmem [shape: f32[3], index: 0, kind: input, shape index: {}]
  %s1 = inlined_call_operand.vmem [shape: f32[32,1], index: 1, kind: input, shape index: {}]
  %s2 = inlined_call_operand.vmem [shape: f32[32,1], index: 2, kind: input, shape index: {}]
  %s3 = inlined_call_operand.vmem [shape: f32[32,128], index: 3, kind: input, shape index: {}]
  %s4 = inlined_call_operand.vmem [shape: f32[32,1], index: 4, kind: output, shape index: {0}]
  %s5 = inlined_call_operand.vmem [shape: f32[17,3], index: 5, kind: output, shape index: {1}]
  %s6 = inlined_call_operand.hbm [shape: f32[1,128], index: 6, kind: output, shape index: {2}]
  %7 = xla_tuple %s4, %s5, %s6
  %s8 = sld [smem:[#allocation0]]
  $region46: #{tpu_custom_call.1} parent=0
    _
  %s10 = ssub.s32 1, %s8
  %s11 = scalar_select 0, %s10, %s8
  $region1: #{tpu_custom_call.1} parent=0
    #allocation2 [shape = 'u8[512]{0}', space=smem, size = 0x200, scoped, tag = 'input window, operand 0, single buffered']
    #allocation3 [shape = 's32[1]{0}', space=sflag, size = 0x4, scoped, tag = 'scoped memory for tpu_custom_call.1']
    #allocation4 [shape = 's32[1]{0}', space=sflag, size = 0x4, scoped, tag = 'scoped memory for tpu_custom_call.1']
    #allocation5 [shape = 'u8[512]{0}', space=vmem, size = 0x400, scoped, tag = 'output window, operand 2, single buffered']
    %12 = vsyncpa [#allocation4], 0
    %13 = vsyncpa [#allocation3], 0
    // Predicated region
    $region2: #{tpu_custom_call.1} parent=1 // pred_check
      _
    $region3: #{tpu_custom_call.1} parent=1 // pred_check_branch
      %15 = sbr.rel (0) target = $region5
    $region4: #{tpu_custom_call.1} parent=1 // pred_region
      %17 = vsyncadd [#allocation4], 0
      %s19 = sshll.u32 %s0, 4
      %s20 = int_to_ptr.vmem [resolvable:$true] %s19
      %22 = dma.vmem_to_smem %s20, 16, [#allocation2], [#allocation4]
    $region5: #{tpu_custom_call.1} parent=1 // pred_fallthru
      _
    // Predicated region
    $region6: #{tpu_custom_call.1} parent=1 // pred_check
      _
    $region7: #{tpu_custom_call.1} parent=1 // pred_check_branch
      %24 = sbr.rel (0) target = $region9
    $region8: #{tpu_custom_call.1} parent=1 // pred_region
      _
    $region9: #{tpu_custom_call.1} parent=1 // pred_fallthru
      _
    // Predicated region
    $region10: #{tpu_custom_call.1} parent=1 // pred_check
      _
    $region11: #{tpu_custom_call.1} parent=1 // pred_check_branch
      %26 = sbr.rel (0) target = $region13
    $region12: #{tpu_custom_call.1} parent=1 // pred_region
      _
    $region13: #{tpu_custom_call.1} parent=1 // pred_fallthru
      _
    // Predicated region
    $region14: #{tpu_custom_call.1} parent=1 // pred_check
      _
    $region15: #{tpu_custom_call.1} parent=1 // pred_check_branch
      %28 = sbr.rel (0) target = $region17
    $region16: #{tpu_custom_call.1} parent=1 // pred_region
      _
    $region17: #{tpu_custom_call.1} parent=1 // pred_fallthru
      _
    // Predicated region
    $region18: #{tpu_custom_call.1} parent=1 // pred_check
      _
    $region19: #{tpu_custom_call.1} parent=1 // pred_check_branch
      %30 = sbr.rel (0) target = $region21
    $region20: #{tpu_custom_call.1} parent=1 // pred_region
      %32 = dma.done [#allocation4], 16
    $region21: #{tpu_custom_call.1} parent=1 // pred_fallthru
      _
    %33 = sfence
    %s34 = sld [smem:[#allocation2]]
    %s35 = sld [smem:[#allocation2 + $0x1]]
    %s36 = sld [smem:[#allocation2 + $0x2]]
    %v37 = vld [vmem:[%s3] sm:$0xff]
    %v38 = vld [vmem:[%s3 + $0x8] sm:$0xff]
    %v39 = vld [vmem:[%s3 + $0x10] sm:$0xff]
    %v40 = vld [vmem:[%s3 + $0x18] sm:$0xff]
    %v41 = vld [vmem:[%s1] sm:$0xff]
    %v42 = vld [vmem:[%s1 + $0x8] sm:$0xff]
    %v43 = vld [vmem:[%s1 + $0x10] sm:$0xff]
    %v44 = vld [vmem:[%s1 + $0x18] sm:$0xff]
    %46 = vset.pattern.permute.xlu0 0
    %47 = vperm.xlu0 %46, %v41
    %v48 = vpop.permute.xlu0 %47
    %51 = vset.pattern.permute.xlu0 0
    %52 = vperm.xlu0 %51, %v42
    %v53 = vpop.permute.xlu0 %52
    %56 = vset.pattern.permute.xlu0 0
    %57 = vperm.xlu0 %56, %v43
    %v58 = vpop.permute.xlu0 %57
    %61 = vset.pattern.permute.xlu0 0
    %62 = vperm.xlu0 %61, %v44
    %v63 = vpop.permute.xlu0 %62
    %v65 = vadd.f32 %v37, %v48
    %v66 = vadd.f32 %v38, %v53
    %v67 = vadd.f32 %v39, %v58
    %v68 = vadd.f32 %v40, %v63
    %v69 = vlaneseq
    %v70 = vshrl.u32 %v69, 7
    %v71 = vadd.s32 %v70, 8
    %v72 = vadd.s32 %v70, 16
    %v73 = vadd.s32 %v70, 24
    %vm74 = vcmp.lt.s32.totalorder %v70, 16
    %vm75 = vcmp.lt.s32.totalorder %v71, 16
    %vm76 = vcmp.lt.s32.totalorder %v72, 16
    %vm77 = vcmp.lt.s32.totalorder %v73, 16
    %v78 = vsel %vm74, -2.0, -1.0
    %v79 = vsel %vm75, -2.0, -1.0
    %v80 = vsel %vm76, -2.0, -1.0
    %v81 = vsel %vm77, -2.0, -1.0
    %v82 = vsel %vm74, 2.0, 1.0
    %v83 = vsel %vm75, 2.0, 1.0
    %v84 = vsel %vm76, 2.0, 1.0
    %v85 = vsel %vm77, 2.0, 1.0
    %v86 = vmax.f32 %v65, %v78
    %v87 = vmax.f32 %v66, %v79
    %v88 = vmax.f32 %v67, %v80
    %v89 = vmax.f32 %v68, %v81
    %v90 = vmin.f32 %v86, %v82
    %v91 = vmin.f32 %v87, %v83
    %v92 = vmin.f32 %v88, %v84
    %v93 = vmin.f32 %v89, %v85
    %v94 = vmul.f32 %v92, 0.1
    %v95 = vmul.f32 %v93, 0.1
    %vm98 = vcmask 1040384
    %v99 = vrot.slane %v94, 7
    %v100 = vrot.slane %v95, 7
    %v101 = vsel %vm98, %v99, %v100
    %v104 = vsel %vm98, 0.0, %v99
    %v105 = vadd.f32 %v94, %v104
    %v106 = vadd.f32 %v95, %v101
    %vm109 = vcmask 1041408
    %v110 = vrot.slane %v105, 6
    %v111 = vrot.slane %v106, 6
    %v112 = vsel %vm109, %v110, %v111
    %v115 = vsel %vm109, 0.0, %v110
    %v116 = vadd.f32 %v105, %v115
    %v117 = vadd.f32 %v106, %v112
    %vm120 = vcmask 1043456
    %v121 = vrot.slane %v116, 4
    %v122 = vrot.slane %v117, 4
    %v123 = vsel %vm120, %v121, %v122
    %v126 = vsel %vm120, 0.0, %v121
    %v127 = vadd.f32 %v116, %v126
    %v128 = vadd.f32 %v117, %v123
    %v129 = vadd.f32 %v127, 0.0
    %v130 = vadd.f32 %v128, %v127
    %v133 = vrot.slane %v129, 7
    %v134 = vrot.slane %v130, 7
    %v135 = vsel %vm98, %v133, %v134
    %v138 = vsel %vm98, 0.0, %v133
    %v139 = vstv %s36
    %v140 = vadd.f32 %v139, %v138
    %v141 = vadd.f32 %v139, %v135
    %v142 = vand.u32 2147483647, %v140
    %vm143 = vcmp.le.f32.partialorder %v142, 0.7853982
    %vm144 = vcmp.lt.s32.totalorder %v140, 0
    %v145 = vand.u32 %v140, 2139095040
    %v146 = vshrl.u32 %v145, 23
    %v147 = vsub.s32 %v146, 127
    %v148 = vand.u32 2147483647, %v140
    %v149 = vand.u32 %v148, 8388607
    %v150 = vor.u32 %v149, 8388608
    %v151 = vsub.s32 0, %v150
    %v152 = vadd.s32 %v147, 1
    %vm153 = vcmp.gt.s32.totalorder %v152, 0
    %v154 = vsel %vm153, %v152, 0
    %v155 = vshrl.u32 %v154, 5
    %v156 = vand.u32 %v154, 31
    %v157 = vsub.s32 32, %v156
    %v158 = vshrl.u32 683565275, %v157
    %v159 = vshll.u32 683565275, %v156
    %v160 = vshrl.u32 2475754826, %v157
    %v161 = vor.u32 %v159, %v160
    %v162 = vshll.u32 2475754826, %v156
    %v163 = vshrl.u32 2131351028, %v157
    %v164 = vor.u32 %v162, %v163
    %v165 = vshll.u32 2131351028, %v156
    %v166 = vshrl.u32 2102212464, %v157
    %v167 = vor.u32 %v165, %v166
    %v168 = vshll.u32 2102212464, %v156
    %v169 = vshrl.u32 920167782, %v157
    %v170 = vor.u32 %v168, %v169
    %v171 = vshll.u32 920167782, %v156
    %v172 = vshrl.u32 1326507024, %v157
    %v173 = vor.u32 %v171, %v172
    %vm174 = vcmp.lt.s32.totalorder %v155, 1
    %vm175 = vcmp.lt.s32.totalorder %v155, 2
    %vm176 = vcmp.lt.s32.totalorder %v155, 3
    %vm177 = vcmp.lt.s32.totalorder %v155, 4
    %v178 = vsel %vm174, %v158, %v161
    %v179 = vsel %vm177, %v167, 2102212464
    %v180 = vsel %vm176, %v164, %v179
    %v181 = vsel %vm175, %v178, %v180
    %v182 = vsel %vm174, %v161, %v164
    %v183 = vsel %vm177, %v170, 920167782
    %v184 = vsel %vm176, %v167, %v183
    %v185 = vsel %vm175, %v182, %v184
    %v186 = vsel %vm174, %v164, %v167
    %v187 = vsel %vm177, %v173, 1326507024
    %v188 = vsel %vm176, %v170, %v187
    %v189 = vsel %vm175, %v186, %v188
    %v190 = vshll.u32 %v150, 8
    %v191 = vand.u32 %v190, 65535
    %v192 = vshrl.u32 %v190, 16
    %v193 = vand.u32 %v189, 65535
    %v194 = vshrl.u32 %v189, 16
    %v195 = vmul.u32 %v191, %v193
    %v196 = vmul.u32 %v191, %v194
    %v197 = vmul.u32 %v192, %v193
    %v198 = vmul.u32 %v192, %v194
    %v199 = vshll.u32 %v196, 16
    %v200 = vshrl.u32 %v196, 16
    %v201 = vshll.u32 %v197, 16
    %v202 = vshrl.u32 %v197, 16
    %vm203 = vc.u32 %v195, %v199
    %v204 = vsel %vm203, 1, 0
    %v205 = vadd.s32 %v195, %v199
    %v206 = vadd.s32 %v198, %v204
    %vm207 = vc.u32 %v205, %v201
    %v208 = vsel %vm207, 1, 0
    %v209 = vadd.s32 %v205, %v201
    %v210 = vadd.s32 %v206, %v208
    %v211 = vadd.s32 %v210, %v200
    %v212 = vadd.s32 %v211, %v202
    %v213 = vand.u32 %v190, 65535
    %v214 = vshrl.u32 %v190, 16
    %v215 = vand.u32 %v185, 65535
    %v216 = vshrl.u32 %v185, 16
    %v217 = vmul.u32 %v213, %v215
    %v218 = vmul.u32 %v213, %v216
    %v219 = vmul.u32 %v214, %v215
    %v220 = vmul.u32 %v214, %v216
    %v221 = vshll.u32 %v218, 16
    %v222 = vshrl.u32 %v218, 16
    %v223 = vshll.u32 %v219, 16
    %v224 = vshrl.u32 %v219, 16
    %vm225 = vc.u32 %v217, %v221
    %v226 = vsel %vm225, 1, 0
    %v227 = vadd.s32 %v217, %v221
    %v228 = vadd.s32 %v220, %v226
    %vm229 = vc.u32 %v227, %v223
    %v230 = vsel %vm229, 1, 0
    %v231 = vadd.s32 %v227, %v223
    %v232 = vadd.s32 %v228, %v230
    %v233 = vadd.s32 %v232, %v222
    %v234 = vadd.s32 %v233, %v224
    %v235 = vmul.u32 %v190, %v181
    %v236 = vadd.s32 %v212, %v231
    %vm237 = vc.u32 %v212, %v231
    %v238 = vadd.s32 %v234, 1
    %v239 = vsel %vm237, %v238, %v234
    %v240 = vadd.s32 %v235, %v239
    %v241 = vadd.s32 %v240, 536870912
    %v242 = vshrl.u32 %v241, 30
    %v243 = vshll.u32 %v242, 30
    %v244 = vsub.s32 %v240, %v243
    %vm245 = vcmp.lt.s32.totalorder %v244, 0
    %v246 = vsub.s32 0, %v244
    %v247 = vsel %vm245, %v246, %v244
    %v248 = vclz %v247
    %v249 = vsub.s32 %v248, 2
    %vm250 = vcmp.gt.s32.totalorder 0, %v249
    %v251 = vsel %vm250, 0, %v249
    %v252 = vsub.s32 32, %v251
    %v253 = vshll.u32 %v244, %v251
    %v254 = vshrl.u32 %v236, %v252
    %v255 = vor.u32 %v253, %v254
    %v256 = vsub.s32 4294967266, %v251
    %v257 = vadd.s32 %v256, 127
    %v258 = vshll.u32 %v257, 23
    %v259 = vor.u32 4788187, %v258
    %v260 = vand.u32 2147483647, %v259
    %v262 = vcvt.s32.f32 %v255
    %v263 = vmul.f32 %v262, %v260
    %v264 = vxor.u32 %v263, 2147483648
    %v265 = vsel %vm144, %v264, %v263
    %v266 = vsub.s32 4, %v242
    %v267 = vsel %vm144, %v266, %v242
    %v268 = vsel %vm143, %v140, %v265
    %v269 = vsel %vm143, 0, %v267
    %v270 = vmul.f32 %v268, %v268
    %v271 = vmul.f32 %v270, -0.001358992
    %v272 = vadd.f32 %v271, 0.041655596
    %v273 = vmul.f32 %v270, %v272
    %v274 = vadd.f32 %v273, -0.4999988
    %v275 = vmul.f32 %v270, %v274
    %v276 = vadd.f32 1.0, %v275
    %v277 = vmul.f32 %v268, %v268
    %v278 = vmul.f32 %v277, -0.00019511016
    %v279 = vadd.f32 %v278, 0.008332121
    %v280 = vmul.f32 %v277, %v279
    %v281 = vadd.f32 %v280, -0.16666654
    %v282 = vmul.f32 %v277, %v281
    %v283 = vadd.f32 %v282, 1.0
    %v284 = vmul.f32 %v283, %v268
    %vm285 = vweird.f32 %v140
    %v286 = vand.u32 %v269, 3
    %vm287 = vcmp.lt.s32.totalorder %v286, 2
    %vm288 = vcmp.eq.s32.totalorder %v286, 0
    %v289 = vxor.u32 %v284, 2147483648
    %v290 = vsel %vm288, %v276, %v289
    %vm291 = vcmp.eq.s32.totalorder %v286, 2
    %v292 = vxor.u32 %v276, 2147483648
    %v293 = vsel %vm291, %v292, %v284
    %v294 = vsel %vm287, %v290, %v293
    %v295 = vsel %vm285, nan, %v294
    %v296 = vand.u32 2147483647, %v141
    %vm297 = vcmp.le.f32.partialorder %v296, 0.7853982
    %vm298 = vcmp.lt.s32.totalorder %v141, 0
    %v299 = vand.u32 %v141, 2139095040
    %v300 = vshrl.u32 %v299, 23
    %v301 = vsub.s32 %v300, 127
    %v302 = vand.u32 2147483647, %v141
    %v303 = vand.u32 %v302, 8388607
    %v304 = vor.u32 %v303, 8388608
    %v305 = vsub.s32 0, %v304
    %v306 = vadd.s32 %v301, 1
    %vm307 = vcmp.gt.s32.totalorder %v306, 0
    %v308 = vsel %vm307, %v306, 0
    %v309 = vshrl.u32 %v308, 5
    %v310 = vand.u32 %v308, 31
    %v311 = vsub.s32 32, %v310
    %v312 = vshrl.u32 683565275, %v311
    %v313 = vshll.u32 683565275, %v310
    %v314 = vshrl.u32 2475754826, %v311
    %v315 = vor.u32 %v313, %v314
    %v316 = vshll.u32 2475754826, %v310
    %v317 = vshrl.u32 2131351028, %v311
    %v318 = vor.u32 %v316, %v317
    %v319 = vshll.u32 2131351028, %v310
    %v320 = vshrl.u32 2102212464, %v311
    %v321 = vor.u32 %v319, %v320
    %v322 = vshll.u32 2102212464, %v310
    %v323 = vshrl.u32 920167782, %v311
    %v324 = vor.u32 %v322, %v323
    %v325 = vshll.u32 920167782, %v310
    %v326 = vshrl.u32 1326507024, %v311
    %v327 = vor.u32 %v325, %v326
    %vm328 = vcmp.lt.s32.totalorder %v309, 1
    %vm329 = vcmp.lt.s32.totalorder %v309, 2
    %vm330 = vcmp.lt.s32.totalorder %v309, 3
    %vm331 = vcmp.lt.s32.totalorder %v309, 4
    %v332 = vsel %vm328, %v312, %v315
    %v333 = vsel %vm331, %v321, 2102212464
    %v334 = vsel %vm330, %v318, %v333
    %v335 = vsel %vm329, %v332, %v334
    %v336 = vsel %vm328, %v315, %v318
    %v337 = vsel %vm331, %v324, 920167782
    %v338 = vsel %vm330, %v321, %v337
    %v339 = vsel %vm329, %v336, %v338
    %v340 = vsel %vm328, %v318, %v321
    %v341 = vsel %vm331, %v327, 1326507024
    %v342 = vsel %vm330, %v324, %v341
    %v343 = vsel %vm329, %v340, %v342
    %v344 = vshll.u32 %v304, 8
    %v345 = vand.u32 %v344, 65535
    %v346 = vshrl.u32 %v344, 16
    %v347 = vand.u32 %v343, 65535
    %v348 = vshrl.u32 %v343, 16
    %v349 = vmul.u32 %v345, %v347
    %v350 = vmul.u32 %v345, %v348
    %v351 = vmul.u32 %v346, %v347
    %v352 = vmul.u32 %v346, %v348
    %v353 = vshll.u32 %v350, 16
    %v354 = vshrl.u32 %v350, 16
    %v355 = vshll.u32 %v351, 16
    %v356 = vshrl.u32 %v351, 16
    %vm357 = vc.u32 %v349, %v353
    %v358 = vsel %vm357, 1, 0
    %v359 = vadd.s32 %v349, %v353
    %v360 = vadd.s32 %v352, %v358
    %vm361 = vc.u32 %v359, %v355
    %v362 = vsel %vm361, 1, 0
    %v363 = vadd.s32 %v359, %v355
    %v364 = vadd.s32 %v360, %v362
    %v365 = vadd.s32 %v364, %v354
    %v366 = vadd.s32 %v365, %v356
    %v367 = vand.u32 %v344, 65535
    %v368 = vshrl.u32 %v344, 16
    %v369 = vand.u32 %v339, 65535
    %v370 = vshrl.u32 %v339, 16
    %v371 = vmul.u32 %v367, %v369
    %v372 = vmul.u32 %v367, %v370
    %v373 = vmul.u32 %v368, %v369
    %v374 = vmul.u32 %v368, %v370
    %v375 = vshll.u32 %v372, 16
    %v376 = vshrl.u32 %v372, 16
    %v377 = vshll.u32 %v373, 16
    %v378 = vshrl.u32 %v373, 16
    %vm379 = vc.u32 %v371, %v375
    %v380 = vsel %vm379, 1, 0
    %v381 = vadd.s32 %v371, %v375
    %v382 = vadd.s32 %v374, %v380
    %vm383 = vc.u32 %v381, %v377
    %v384 = vsel %vm383, 1, 0
    %v385 = vadd.s32 %v381, %v377
    %v386 = vadd.s32 %v382, %v384
    %v387 = vadd.s32 %v386, %v376
    %v388 = vadd.s32 %v387, %v378
    %v389 = vmul.u32 %v344, %v335
    %v390 = vadd.s32 %v366, %v385
    %vm391 = vc.u32 %v366, %v385
    %v392 = vadd.s32 %v388, 1
    %v393 = vsel %vm391, %v392, %v388
    %v394 = vadd.s32 %v389, %v393
    %v395 = vadd.s32 %v394, 536870912
    %v396 = vshrl.u32 %v395, 30
    %v397 = vshll.u32 %v396, 30
    %v398 = vsub.s32 %v394, %v397
    %vm399 = vcmp.lt.s32.totalorder %v398, 0
    %v400 = vsub.s32 0, %v398
    %v401 = vsel %vm399, %v400, %v398
    %v402 = vclz %v401
    %v403 = vsub.s32 %v402, 2
    %vm404 = vcmp.gt.s32.totalorder 0, %v403
    %v405 = vsel %vm404, 0, %v403
    %v406 = vsub.s32 32, %v405
    %v407 = vshll.u32 %v398, %v405
    %v408 = vshrl.u32 %v390, %v406
    %v409 = vor.u32 %v407, %v408
    %v410 = vsub.s32 4294967266, %v405
    %v411 = vadd.s32 %v410, 127
    %v412 = vshll.u32 %v411, 23
    %v413 = vor.u32 4788187, %v412
    %v414 = vand.u32 2147483647, %v413
    %v416 = vcvt.s32.f32 %v409
    %v417 = vmul.f32 %v416, %v414
    %v418 = vxor.u32 %v417, 2147483648
    %v419 = vsel %vm298, %v418, %v417
    %v420 = vsub.s32 4, %v396
    %v421 = vsel %vm298, %v420, %v396
    %v422 = vsel %vm297, %v141, %v419
    %v423 = vsel %vm297, 0, %v421
    %v424 = vmul.f32 %v422, %v422
    %v425 = vmul.f32 %v424, -0.001358992
    %v426 = vadd.f32 %v425, 0.041655596
    %v427 = vmul.f32 %v424, %v426
    %v428 = vadd.f32 %v427, -0.4999988
    %v429 = vmul.f32 %v424, %v428
    %v430 = vadd.f32 1.0, %v429
    %v431 = vmul.f32 %v422, %v422
    %v432 = vmul.f32 %v431, -0.00019511016
    %v433 = vadd.f32 %v432, 0.008332121
    %v434 = vmul.f32 %v431, %v433
    %v435 = vadd.f32 %v434, -0.16666654
    %v436 = vmul.f32 %v431, %v435
    %v437 = vadd.f32 %v436, 1.0
    %v438 = vmul.f32 %v437, %v422
    %vm439 = vweird.f32 %v141
    %v440 = vand.u32 %v423, 3
    %vm441 = vcmp.lt.s32.totalorder %v440, 2
    %vm442 = vcmp.eq.s32.totalorder %v440, 0
    %v443 = vxor.u32 %v438, 2147483648
    %v444 = vsel %vm442, %v430, %v443
    %vm445 = vcmp.eq.s32.totalorder %v440, 2
    %v446 = vxor.u32 %v430, 2147483648
    %v447 = vsel %vm445, %v446, %v438
    %v448 = vsel %vm441, %v444, %v447
    %v449 = vsel %vm439, nan, %v448
    %v450 = vmul.f32 %v90, %v295
    %v451 = vmul.f32 %v91, %v449
    %v452 = vmul.f32 %v450, 0.1
    %v453 = vmul.f32 %v451, 0.1
    %v454 = vand.u32 2147483647, %v140
    %vm455 = vcmp.le.f32.partialorder %v454, 0.7853982
    %vm456 = vcmp.lt.s32.totalorder %v140, 0
    %v457 = vand.u32 %v140, 2139095040
    %v458 = vshrl.u32 %v457, 23
    %v459 = vsub.s32 %v458, 127
    %v460 = vand.u32 2147483647, %v140
    %v461 = vand.u32 %v460, 8388607
    %v462 = vor.u32 %v461, 8388608
    %v463 = vsub.s32 0, %v462
    %v464 = vadd.s32 %v459, 1
    %vm465 = vcmp.gt.s32.totalorder %v464, 0
    %v466 = vsel %vm465, %v464, 0
    %v467 = vshrl.u32 %v466, 5
    %v468 = vand.u32 %v466, 31
    %v469 = vsub.s32 32, %v468
    %v470 = vshrl.u32 683565275, %v469
    %v471 = vshll.u32 683565275, %v468
    %v472 = vshrl.u32 2475754826, %v469
    %v473 = vor.u32 %v471, %v472
    %v474 = vshll.u32 2475754826, %v468
    %v475 = vshrl.u32 2131351028, %v469
    %v476 = vor.u32 %v474, %v475
    %v477 = vshll.u32 2131351028, %v468
    %v478 = vshrl.u32 2102212464, %v469
    %v479 = vor.u32 %v477, %v478
    %v480 = vshll.u32 2102212464, %v468
    %v481 = vshrl.u32 920167782, %v469
    %v482 = vor.u32 %v480, %v481
    %v483 = vshll.u32 920167782, %v468
    %v484 = vshrl.u32 1326507024, %v469
    %v485 = vor.u32 %v483, %v484
    %vm486 = vcmp.lt.s32.totalorder %v467, 1
    %vm487 = vcmp.lt.s32.totalorder %v467, 2
    %vm488 = vcmp.lt.s32.totalorder %v467, 3
    %vm489 = vcmp.lt.s32.totalorder %v467, 4
    %v490 = vsel %vm486, %v470, %v473
    %v491 = vsel %vm489, %v479, 2102212464
    %v492 = vsel %vm488, %v476, %v491
    %v493 = vsel %vm487, %v490, %v492
    %v494 = vsel %vm486, %v473, %v476
    %v495 = vsel %vm489, %v482, 920167782
    %v496 = vsel %vm488, %v479, %v495
    %v497 = vsel %vm487, %v494, %v496
    %v498 = vsel %vm486, %v476, %v479
    %v499 = vsel %vm489, %v485, 1326507024
    %v500 = vsel %vm488, %v482, %v499
    %v501 = vsel %vm487, %v498, %v500
    %v502 = vshll.u32 %v462, 8
    %v503 = vand.u32 %v502, 65535
    %v504 = vshrl.u32 %v502, 16
    %v505 = vand.u32 %v501, 65535
    %v506 = vshrl.u32 %v501, 16
    %v507 = vmul.u32 %v503, %v505
    %v508 = vmul.u32 %v503, %v506
    %v509 = vmul.u32 %v504, %v505
    %v510 = vmul.u32 %v504, %v506
    %v511 = vshll.u32 %v508, 16
    %v512 = vshrl.u32 %v508, 16
    %v513 = vshll.u32 %v509, 16
    %v514 = vshrl.u32 %v509, 16
    %vm515 = vc.u32 %v507, %v511
    %v516 = vsel %vm515, 1, 0
    %v517 = vadd.s32 %v507, %v511
    %v518 = vadd.s32 %v510, %v516
    %vm519 = vc.u32 %v517, %v513
    %v520 = vsel %vm519, 1, 0
    %v521 = vadd.s32 %v517, %v513
    %v522 = vadd.s32 %v518, %v520
    %v523 = vadd.s32 %v522, %v512
    %v524 = vadd.s32 %v523, %v514
    %v525 = vand.u32 %v502, 65535
    %v526 = vshrl.u32 %v502, 16
    %v527 = vand.u32 %v497, 65535
    %v528 = vshrl.u32 %v497, 16
    %v529 = vmul.u32 %v525, %v527
    %v530 = vmul.u32 %v525, %v528
    %v531 = vmul.u32 %v526, %v527
    %v532 = vmul.u32 %v526, %v528
    %v533 = vshll.u32 %v530, 16
    %v534 = vshrl.u32 %v530, 16
    %v535 = vshll.u32 %v531, 16
    %v536 = vshrl.u32 %v531, 16
    %vm537 = vc.u32 %v529, %v533
    %v538 = vsel %vm537, 1, 0
    %v539 = vadd.s32 %v529, %v533
    %v540 = vadd.s32 %v532, %v538
    %vm541 = vc.u32 %v539, %v535
    %v542 = vsel %vm541, 1, 0
    %v543 = vadd.s32 %v539, %v535
    %v544 = vadd.s32 %v540, %v542
    %v545 = vadd.s32 %v544, %v534
    %v546 = vadd.s32 %v545, %v536
    %v547 = vmul.u32 %v502, %v493
    %v548 = vadd.s32 %v524, %v543
    %vm549 = vc.u32 %v524, %v543
    %v550 = vadd.s32 %v546, 1
    %v551 = vsel %vm549, %v550, %v546
    %v552 = vadd.s32 %v547, %v551
    %v553 = vadd.s32 %v552, 536870912
    %v554 = vshrl.u32 %v553, 30
    %v555 = vshll.u32 %v554, 30
    %v556 = vsub.s32 %v552, %v555
    %vm557 = vcmp.lt.s32.totalorder %v556, 0
    %v558 = vsub.s32 0, %v556
    %v559 = vsel %vm557, %v558, %v556
    %v560 = vclz %v559
    %v561 = vsub.s32 %v560, 2
    %vm562 = vcmp.gt.s32.totalorder 0, %v561
    %v563 = vsel %vm562, 0, %v561
    %v564 = vsub.s32 32, %v563
    %v565 = vshll.u32 %v556, %v563
    %v566 = vshrl.u32 %v548, %v564
    %v567 = vor.u32 %v565, %v566
    %v568 = vsub.s32 4294967266, %v563
    %v569 = vadd.s32 %v568, 127
    %v570 = vshll.u32 %v569, 23
    %v571 = vor.u32 4788187, %v570
    %v572 = vand.u32 2147483647, %v571
    %v574 = vcvt.s32.f32 %v567
    %v575 = vmul.f32 %v574, %v572
    %v576 = vxor.u32 %v575, 2147483648
    %v577 = vsel %vm456, %v576, %v575
    %v578 = vsub.s32 4, %v554
    %v579 = vsel %vm456, %v578, %v554
    %v580 = vsel %vm455, %v140, %v577
    %v581 = vsel %vm455, 0, %v579
    %v582 = vmul.f32 %v580, %v580
    %v583 = vmul.f32 %v582, -0.001358992
    %v584 = vadd.f32 %v583, 0.041655596
    %v585 = vmul.f32 %v582, %v584
    %v586 = vadd.f32 %v585, -0.4999988
    %v587 = vmul.f32 %v582, %v586
    %v588 = vadd.f32 1.0, %v587
    %v589 = vmul.f32 %v580, %v580
    %v590 = vmul.f32 %v589, -0.00019511016
    %v591 = vadd.f32 %v590, 0.008332121
    %v592 = vmul.f32 %v589, %v591
    %v593 = vadd.f32 %v592, -0.16666654
    %v594 = vmul.f32 %v589, %v593
    %v595 = vadd.f32 %v594, 1.0
    %v596 = vmul.f32 %v595, %v580
    %vm597 = vweird.f32 %v140
    %v598 = vadd.s32 %v581, 3
    %v599 = vand.u32 %v598, 3
    %vm600 = vcmp.lt.s32.totalorder %v599, 2
    %vm601 = vcmp.eq.s32.totalorder %v599, 0
    %v602 = vxor.u32 %v596, 2147483648
    %v603 = vsel %vm601, %v588, %v602
    %vm604 = vcmp.eq.s32.totalorder %v599, 2
    %v605 = vxor.u32 %v588, 2147483648
    %v606 = vsel %vm604, %v605, %v596
    %v607 = vsel %vm600, %v603, %v606
    %v608 = vsel %vm597, nan, %v607
    %v609 = vand.u32 2147483647, %v141
    %vm610 = vcmp.le.f32.partialorder %v609, 0.7853982
    %vm611 = vcmp.lt.s32.totalorder %v141, 0
    %v612 = vand.u32 %v141, 2139095040
    %v613 = vshrl.u32 %v612, 23
    %v614 = vsub.s32 %v613, 127
    %v615 = vand.u32 2147483647, %v141
    %v616 = vand.u32 %v615, 8388607
    %v617 = vor.u32 %v616, 8388608
    %v618 = vsub.s32 0, %v617
    %v619 = vadd.s32 %v614, 1
    %vm620 = vcmp.gt.s32.totalorder %v619, 0
    %v621 = vsel %vm620, %v619, 0
    %v622 = vshrl.u32 %v621, 5
    %v623 = vand.u32 %v621, 31
    %v624 = vsub.s32 32, %v623
    %v625 = vshrl.u32 683565275, %v624
    %v626 = vshll.u32 683565275, %v623
    %v627 = vshrl.u32 2475754826, %v624
    %v628 = vor.u32 %v626, %v627
    %v629 = vshll.u32 2475754826, %v623
    %v630 = vshrl.u32 2131351028, %v624
    %v631 = vor.u32 %v629, %v630
    %v632 = vshll.u32 2131351028, %v623
    %v633 = vshrl.u32 2102212464, %v624
    %v634 = vor.u32 %v632, %v633
    %v635 = vshll.u32 2102212464, %v623
    %v636 = vshrl.u32 920167782, %v624
    %v637 = vor.u32 %v635, %v636
    %v638 = vshll.u32 920167782, %v623
    %v639 = vshrl.u32 1326507024, %v624
    %v640 = vor.u32 %v638, %v639
    %vm641 = vcmp.lt.s32.totalorder %v622, 1
    %vm642 = vcmp.lt.s32.totalorder %v622, 2
    %vm643 = vcmp.lt.s32.totalorder %v622, 3
    %vm644 = vcmp.lt.s32.totalorder %v622, 4
    %v645 = vsel %vm641, %v625, %v628
    %v646 = vsel %vm644, %v634, 2102212464
    %v647 = vsel %vm643, %v631, %v646
    %v648 = vsel %vm642, %v645, %v647
    %v649 = vsel %vm641, %v628, %v631
    %v650 = vsel %vm644, %v637, 920167782
    %v651 = vsel %vm643, %v634, %v650
    %v652 = vsel %vm642, %v649, %v651
    %v653 = vsel %vm641, %v631, %v634
    %v654 = vsel %vm644, %v640, 1326507024
    %v655 = vsel %vm643, %v637, %v654
    %v656 = vsel %vm642, %v653, %v655
    %v657 = vshll.u32 %v617, 8
    %v658 = vand.u32 %v657, 65535
    %v659 = vshrl.u32 %v657, 16
    %v660 = vand.u32 %v656, 65535
    %v661 = vshrl.u32 %v656, 16
    %v662 = vmul.u32 %v658, %v660
    %v663 = vmul.u32 %v658, %v661
    %v664 = vmul.u32 %v659, %v660
    %v665 = vmul.u32 %v659, %v661
    %v666 = vshll.u32 %v663, 16
    %v667 = vshrl.u32 %v663, 16
    %v668 = vshll.u32 %v664, 16
    %v669 = vshrl.u32 %v664, 16
    %vm670 = vc.u32 %v662, %v666
    %v671 = vsel %vm670, 1, 0
    %v672 = vadd.s32 %v662, %v666
    %v673 = vadd.s32 %v665, %v671
    %vm674 = vc.u32 %v672, %v668
    %v675 = vsel %vm674, 1, 0
    %v676 = vadd.s32 %v672, %v668
    %v677 = vadd.s32 %v673, %v675
    %v678 = vadd.s32 %v677, %v667
    %v679 = vadd.s32 %v678, %v669
    %v680 = vand.u32 %v657, 65535
    %v681 = vshrl.u32 %v657, 16
    %v682 = vand.u32 %v652, 65535
    %v683 = vshrl.u32 %v652, 16
    %v684 = vmul.u32 %v680, %v682
    %v685 = vmul.u32 %v680, %v683
    %v686 = vmul.u32 %v681, %v682
    %v687 = vmul.u32 %v681, %v683
    %v688 = vshll.u32 %v685, 16
    %v689 = vshrl.u32 %v685, 16
    %v690 = vshll.u32 %v686, 16
    %v691 = vshrl.u32 %v686, 16
    %vm692 = vc.u32 %v684, %v688
    %v693 = vsel %vm692, 1, 0
    %v694 = vadd.s32 %v684, %v688
    %v695 = vadd.s32 %v687, %v693
    %vm696 = vc.u32 %v694, %v690
    %v697 = vsel %vm696, 1, 0
    %v698 = vadd.s32 %v694, %v690
    %v699 = vadd.s32 %v695, %v697
    %v700 = vadd.s32 %v699, %v689
    %v701 = vadd.s32 %v700, %v691
    %v702 = vmul.u32 %v657, %v648
    %v703 = vadd.s32 %v679, %v698
    %vm704 = vc.u32 %v679, %v698
    %v705 = vadd.s32 %v701, 1
    %v706 = vsel %vm704, %v705, %v701
    %v707 = vadd.s32 %v702, %v706
    %v708 = vadd.s32 %v707, 536870912
    %v709 = vshrl.u32 %v708, 30
    %v710 = vshll.u32 %v709, 30
    %v711 = vsub.s32 %v707, %v710
    %vm712 = vcmp.lt.s32.totalorder %v711, 0
    %v713 = vsub.s32 0, %v711
    %v714 = vsel %vm712, %v713, %v711
    %v715 = vclz %v714
    %v716 = vsub.s32 %v715, 2
    %vm717 = vcmp.gt.s32.totalorder 0, %v716
    %v718 = vsel %vm717, 0, %v716
    %v719 = vsub.s32 32, %v718
    %v720 = vshll.u32 %v711, %v718
    %v721 = vshrl.u32 %v703, %v719
    %v722 = vor.u32 %v720, %v721
    %v723 = vsub.s32 4294967266, %v718
    %v724 = vadd.s32 %v723, 127
    %v725 = vshll.u32 %v724, 23
    %v726 = vor.u32 4788187, %v725
    %v727 = vand.u32 2147483647, %v726
    %v729 = vcvt.s32.f32 %v722
    %v730 = vmul.f32 %v729, %v727
    %v731 = vxor.u32 %v730, 2147483648
    %v732 = vsel %vm611, %v731, %v730
    %v733 = vsub.s32 4, %v709
    %v734 = vsel %vm611, %v733, %v709
    %v735 = vsel %vm610, %v141, %v732
    %v736 = vsel %vm610, 0, %v734
    %v737 = vmul.f32 %v735, %v735
    %v738 = vmul.f32 %v737, -0.001358992
    %v739 = vadd.f32 %v738, 0.041655596
    %v740 = vmul.f32 %v737, %v739
    %v741 = vadd.f32 %v740, -0.4999988
    %v742 = vmul.f32 %v737, %v741
    %v743 = vadd.f32 1.0, %v742
    %v744 = vmul.f32 %v735, %v735
    %v745 = vmul.f32 %v744, -0.00019511016
    %v746 = vadd.f32 %v745, 0.008332121
    %v747 = vmul.f32 %v744, %v746
    %v748 = vadd.f32 %v747, -0.16666654
    %v749 = vmul.f32 %v744, %v748
    %v750 = vadd.f32 %v749, 1.0
    %v751 = vmul.f32 %v750, %v735
    %vm752 = vweird.f32 %v141
    %v753 = vadd.s32 %v736, 3
    %v754 = vand.u32 %v753, 3
    %vm755 = vcmp.lt.s32.totalorder %v754, 2
    %vm756 = vcmp.eq.s32.totalorder %v754, 0
    %v757 = vxor.u32 %v751, 2147483648
    %v758 = vsel %vm756, %v743, %v757
    %vm759 = vcmp.eq.s32.totalorder %v754, 2
    %v760 = vxor.u32 %v743, 2147483648
    %v761 = vsel %vm759, %v760, %v751
    %v762 = vsel %vm755, %v758, %v761
    %v763 = vsel %vm752, nan, %v762
    %v764 = vmul.f32 %v90, %v608
    %v765 = vmul.f32 %v91, %v763
    %v766 = vmul.f32 %v764, 0.1
    %v767 = vmul.f32 %v765, 0.1
    %v772 = vrot.slane %v452, 7
    %v773 = vrot.slane %v766, 7
    %v774 = vrot.slane %v453, 7
    %v775 = vsel %vm98, %v772, %v774
    %v776 = vrot.slane %v767, 7
    %v777 = vsel %vm98, %v773, %v776
    %v782 = vsel %vm98, 0.0, %v772
    %v783 = vsel %vm98, 0.0, %v773
    %v784 = vadd.f32 %v452, %v782
    %v785 = vadd.f32 %v766, %v783
    %v786 = vadd.f32 %v453, %v775
    %v787 = vadd.f32 %v767, %v777
    %v792 = vrot.slane %v784, 6
    %v793 = vrot.slane %v785, 6
    %v794 = vrot.slane %v786, 6
    %v795 = vsel %vm109, %v792, %v794
    %v796 = vrot.slane %v787, 6
    %v797 = vsel %vm109, %v793, %v796
    %v802 = vsel %vm109, 0.0, %v792
    %v803 = vsel %vm109, 0.0, %v793
    %v804 = vadd.f32 %v784, %v802
    %v805 = vadd.f32 %v785, %v803
    %v806 = vadd.f32 %v786, %v795
    %v807 = vadd.f32 %v787, %v797
    %v812 = vrot.slane %v804, 4
    %v813 = vrot.slane %v805, 4
    %v814 = vrot.slane %v806, 4
    %v815 = vsel %vm120, %v812, %v814
    %v816 = vrot.slane %v807, 4
    %v817 = vsel %vm120, %v813, %v816
    %v822 = vsel %vm120, 0.0, %v812
    %v823 = vsel %vm120, 0.0, %v813
    %v824 = vadd.f32 %v804, %v822
    %v825 = vadd.f32 %v805, %v823
    %v826 = vadd.f32 %v806, %v815
    %v827 = vadd.f32 %v807, %v817
    %v828 = vadd.f32 %v824, 0.0
    %v829 = vadd.f32 %v825, 0.0
    %v830 = vadd.f32 %v826, %v824
    %v831 = vadd.f32 %v827, %v825
    %v834 = vrot.slane %v828, 7
    %v835 = vrot.slane %v830, 7
    %v836 = vsel %vm98, %v834, %v835
    %v839 = vsel %vm98, 0.0, %v834
    %v840 = vstv %s34
    %v841 = vadd.f32 %v840, %v839
    %v842 = vadd.f32 %v840, %v836
    %v845 = vrot.slane %v829, 7
    %v846 = vrot.slane %v831, 7
    %v847 = vsel %vm98, %v845, %v846
    %v850 = vsel %vm98, 0.0, %v845
    %v851 = vstv %s35
    %v852 = vadd.f32 %v851, %v850
    %v853 = vadd.f32 %v851, %v847
    %v854 = vsub.f32 %v841, 5.0
    %v855 = vsub.f32 %v842, 5.0
    %v856 = vsub.f32 %v852, 5.0
    %v857 = vsub.f32 %v853, 5.0
    %v858 = vmul.f32 %v854, %v854
    %v859 = vmul.f32 %v855, %v855
    %v860 = vmul.f32 %v856, %v856
    %v861 = vmul.f32 %v857, %v857
    %v862 = vadd.f32 %v858, %v860
    %v863 = vadd.f32 %v859, %v861
    %v864 = vadd.f32 %v862, %v863
    %v865 = vrot.slane %v864, 4
    %v866 = vadd.f32 %v864, %v865
    %v867 = vrot.slane %v866, 2
    %v868 = vadd.f32 %v866, %v867
    %v869 = vrot.slane %v868, 1
    %v870 = vadd.f32 %v868, %v869
    %v871 = vadd.f32 %v840, %v830
    %v872 = vsub.f32 %v871, 5.0
    %v873 = vadd.f32 %v851, %v831
    %v874 = vsub.f32 %v873, 5.0
    %v875 = vmul.f32 %v872, %v872
    %v876 = vmul.f32 %v874, %v874
    %v877 = vadd.f32 %v875, %v876
    %v878 = vmul.f32 %v877, 10.0
    %v879 = vld [vmem:[%s2] sm:$0xff]
    %v880 = vld [vmem:[%s2 + $0x8] sm:$0xff]
    %v881 = vld [vmem:[%s2 + $0x10] sm:$0xff]
    %v882 = vld [vmem:[%s2 + $0x18] sm:$0xff]
    %884 = vset.pattern.permute.xlu0 0
    %885 = vperm.xlu0 %884, %v879
    %v886 = vpop.permute.xlu0 %885
    %889 = vset.pattern.permute.xlu0 0
    %890 = vperm.xlu0 %889, %v880
    %v891 = vpop.permute.xlu0 %890
    %894 = vset.pattern.permute.xlu0 0
    %895 = vperm.xlu0 %894, %v881
    %v896 = vpop.permute.xlu0 %895
    %899 = vset.pattern.permute.xlu0 0
    %900 = vperm.xlu0 %899, %v882
    %v901 = vpop.permute.xlu0 %900
    %v903 = vmul.f32 %v886, %v90
    %v904 = vmul.f32 %v891, %v91
    %v905 = vmul.f32 %v896, %v92
    %v906 = vmul.f32 %v901, %v93
    %v907 = vadd.f32 %v903, %v904
    %v908 = vadd.f32 %v907, %v905
    %v909 = vadd.f32 %v908, %v906
    %v910 = vrot.slane %v909, 4
    %v911 = vadd.f32 %v909, %v910
    %v912 = vrot.slane %v911, 2
    %v913 = vadd.f32 %v911, %v912
    %v914 = vrot.slane %v913, 1
    %v915 = vadd.f32 %v913, %v914
    %v916 = vadd.f32 %v870, %v878
    %v917 = vadd.f32 %v916, %v915
    %v918 = vsub.f32 0.0, %v917
    %vm919 = vcmask 1047559
    %v920 = vsel %vm919, %v918, -inf
    %921 = vmax.xlane.f32.xlu0 %v920
    %v922 = vpop.xlane.xlu0 %921
    %v923 = vsub.f32 %v918, %v922
    %v924 = vmul.f32 %v923, 1.442695
    %v925 = vpow.pop %v924
    %v926 = vsel %vm919, %v925, 0.0
    %927 = vadd.xlane.f32.xlu0 %v926
    %v928 = vpop.xlane.xlu0 %927
    %v929 = vrcp.pop %v928
    %v930 = vmul.f32 %v925, %v929
    %931 = vst [vmem:[#allocation5 - $0x7] sm:$0x80] %v930
    %v932 = vperm.slane %v930, 7
    %v933 = vmul.f32 %v90, %v932
    %v934 = vmul.f32 %v91, %v932
    %v935 = vmul.f32 %v92, %v932
    %v936 = vmul.f32 %v93, %v932
    %937 = vadd.xlane.f32.xlu0 %v933
    %v938 = vpop.xlane.xlu0 %937
    %939 = vadd.xlane.f32.xlu0 %v934
    %v940 = vpop.xlane.xlu0 %939
    %941 = vadd.xlane.f32.xlu0 %v935
    %v942 = vpop.xlane.xlu0 %941
    %943 = vadd.xlane.f32.xlu0 %v936
    %v944 = vpop.xlane.xlu0 %943
    %vm945 = vcmask 7168
    %946 = vst.msk [vmem:[%s4] sm:$0xff] %vm945, %v938
    %947 = vst.msk [vmem:[%s4 + $0x8] sm:$0xff] %vm945, %v940
    %948 = vst.msk [vmem:[%s4 + $0x10] sm:$0xff] %vm945, %v942
    %949 = vst.msk [vmem:[%s4 + $0x18] sm:$0xff] %vm945, %v944
    %v950 = vmul.f32 %v942, 0.1
    %v951 = vmul.f32 %v944, 0.1
    %v954 = vrot.slane %v950, 7
    %v955 = vrot.slane %v951, 7
    %v956 = vsel %vm98, %v954, %v955
    %v959 = vsel %vm98, 0.0, %v954
    %v960 = vadd.f32 %v950, %v959
    %v961 = vadd.f32 %v951, %v956
    %v964 = vrot.slane %v960, 6
    %v965 = vrot.slane %v961, 6
    %v966 = vsel %vm109, %v964, %v965
    %v969 = vsel %vm109, 0.0, %v964
    %v970 = vadd.f32 %v960, %v969
    %v971 = vadd.f32 %v961, %v966
    %v974 = vrot.slane %v970, 4
    %v975 = vrot.slane %v971, 4
    %v976 = vsel %vm120, %v974, %v975
    %v979 = vsel %vm120, 0.0, %v974
    %v980 = vadd.f32 %v970, %v979
    %v981 = vadd.f32 %v971, %v976
    %v982 = vadd.f32 %v980, 0.0
    %v983 = vadd.f32 %v981, %v980
    %v986 = vrot.slane %v982, 7
    %v987 = vrot.slane %v983, 7
    %v988 = vsel %vm98, %v986, %v987
    %v991 = vsel %vm98, 0.0, %v986
    %v992 = vadd.f32 %v139, %v991
    %v993 = vadd.f32 %v139, %v988
    %v994 = vand.u32 2147483647, %v992
    %vm995 = vcmp.le.f32.partialorder %v994, 0.7853982
    %vm996 = vcmp.lt.s32.totalorder %v992, 0
    %v997 = vand.u32 %v992, 2139095040
    %v998 = vshrl.u32 %v997, 23
    %v999 = vsub.s32 %v998, 127
    %v1000 = vand.u32 2147483647, %v992
    %v1001 = vand.u32 %v1000, 8388607
    %v1002 = vor.u32 %v1001, 8388608
    %v1003 = vsub.s32 0, %v1002
    %v1004 = vadd.s32 %v999, 1
    %vm1005 = vcmp.gt.s32.totalorder %v1004, 0
    %v1006 = vsel %vm1005, %v1004, 0
    %v1007 = vshrl.u32 %v1006, 5
    %v1008 = vand.u32 %v1006, 31
    %v1009 = vsub.s32 32, %v1008
    %v1010 = vshrl.u32 683565275, %v1009
    %v1011 = vshll.u32 683565275, %v1008
    %v1012 = vshrl.u32 2475754826, %v1009
    %v1013 = vor.u32 %v1011, %v1012
    %v1014 = vshll.u32 2475754826, %v1008
    %v1015 = vshrl.u32 2131351028, %v1009
    %v1016 = vor.u32 %v1014, %v1015
    %v1017 = vshll.u32 2131351028, %v1008
    %v1018 = vshrl.u32 2102212464, %v1009
    %v1019 = vor.u32 %v1017, %v1018
    %v1020 = vshll.u32 2102212464, %v1008
    %v1021 = vshrl.u32 920167782, %v1009
    %v1022 = vor.u32 %v1020, %v1021
    %v1023 = vshll.u32 920167782, %v1008
    %v1024 = vshrl.u32 1326507024, %v1009
    %v1025 = vor.u32 %v1023, %v1024
    %vm1026 = vcmp.lt.s32.totalorder %v1007, 1
    %vm1027 = vcmp.lt.s32.totalorder %v1007, 2
    %vm1028 = vcmp.lt.s32.totalorder %v1007, 3
    %vm1029 = vcmp.lt.s32.totalorder %v1007, 4
    %v1030 = vsel %vm1026, %v1010, %v1013
    %v1031 = vsel %vm1029, %v1019, 2102212464
    %v1032 = vsel %vm1028, %v1016, %v1031
    %v1033 = vsel %vm1027, %v1030, %v1032
    %v1034 = vsel %vm1026, %v1013, %v1016
    %v1035 = vsel %vm1029, %v1022, 920167782
    %v1036 = vsel %vm1028, %v1019, %v1035
    %v1037 = vsel %vm1027, %v1034, %v1036
    %v1038 = vsel %vm1026, %v1016, %v1019
    %v1039 = vsel %vm1029, %v1025, 1326507024
    %v1040 = vsel %vm1028, %v1022, %v1039
    %v1041 = vsel %vm1027, %v1038, %v1040
    %v1042 = vshll.u32 %v1002, 8
    %v1043 = vand.u32 %v1042, 65535
    %v1044 = vshrl.u32 %v1042, 16
    %v1045 = vand.u32 %v1041, 65535
    %v1046 = vshrl.u32 %v1041, 16
    %v1047 = vmul.u32 %v1043, %v1045
    %v1048 = vmul.u32 %v1043, %v1046
    %v1049 = vmul.u32 %v1044, %v1045
    %v1050 = vmul.u32 %v1044, %v1046
    %v1051 = vshll.u32 %v1048, 16
    %v1052 = vshrl.u32 %v1048, 16
    %v1053 = vshll.u32 %v1049, 16
    %v1054 = vshrl.u32 %v1049, 16
    %vm1055 = vc.u32 %v1047, %v1051
    %v1056 = vsel %vm1055, 1, 0
    %v1057 = vadd.s32 %v1047, %v1051
    %v1058 = vadd.s32 %v1050, %v1056
    %vm1059 = vc.u32 %v1057, %v1053
    %v1060 = vsel %vm1059, 1, 0
    %v1061 = vadd.s32 %v1057, %v1053
    %v1062 = vadd.s32 %v1058, %v1060
    %v1063 = vadd.s32 %v1062, %v1052
    %v1064 = vadd.s32 %v1063, %v1054
    %v1065 = vand.u32 %v1042, 65535
    %v1066 = vshrl.u32 %v1042, 16
    %v1067 = vand.u32 %v1037, 65535
    %v1068 = vshrl.u32 %v1037, 16
    %v1069 = vmul.u32 %v1065, %v1067
    %v1070 = vmul.u32 %v1065, %v1068
    %v1071 = vmul.u32 %v1066, %v1067
    %v1072 = vmul.u32 %v1066, %v1068
    %v1073 = vshll.u32 %v1070, 16
    %v1074 = vshrl.u32 %v1070, 16
    %v1075 = vshll.u32 %v1071, 16
    %v1076 = vshrl.u32 %v1071, 16
    %vm1077 = vc.u32 %v1069, %v1073
    %v1078 = vsel %vm1077, 1, 0
    %v1079 = vadd.s32 %v1069, %v1073
    %v1080 = vadd.s32 %v1072, %v1078
    %vm1081 = vc.u32 %v1079, %v1075
    %v1082 = vsel %vm1081, 1, 0
    %v1083 = vadd.s32 %v1079, %v1075
    %v1084 = vadd.s32 %v1080, %v1082
    %v1085 = vadd.s32 %v1084, %v1074
    %v1086 = vadd.s32 %v1085, %v1076
    %v1087 = vmul.u32 %v1042, %v1033
    %v1088 = vadd.s32 %v1064, %v1083
    %vm1089 = vc.u32 %v1064, %v1083
    %v1090 = vadd.s32 %v1086, 1
    %v1091 = vsel %vm1089, %v1090, %v1086
    %v1092 = vadd.s32 %v1087, %v1091
    %v1093 = vadd.s32 %v1092, 536870912
    %v1094 = vshrl.u32 %v1093, 30
    %v1095 = vshll.u32 %v1094, 30
    %v1096 = vsub.s32 %v1092, %v1095
    %vm1097 = vcmp.lt.s32.totalorder %v1096, 0
    %v1098 = vsub.s32 0, %v1096
    %v1099 = vsel %vm1097, %v1098, %v1096
    %v1100 = vclz %v1099
    %v1101 = vsub.s32 %v1100, 2
    %vm1102 = vcmp.gt.s32.totalorder 0, %v1101
    %v1103 = vsel %vm1102, 0, %v1101
    %v1104 = vsub.s32 32, %v1103
    %v1105 = vshll.u32 %v1096, %v1103
    %v1106 = vshrl.u32 %v1088, %v1104
    %v1107 = vor.u32 %v1105, %v1106
    %v1108 = vsub.s32 4294967266, %v1103
    %v1109 = vadd.s32 %v1108, 127
    %v1110 = vshll.u32 %v1109, 23
    %v1111 = vor.u32 4788187, %v1110
    %v1112 = vand.u32 2147483647, %v1111
    %v1114 = vcvt.s32.f32 %v1107
    %v1115 = vmul.f32 %v1114, %v1112
    %v1116 = vxor.u32 %v1115, 2147483648
    %v1117 = vsel %vm996, %v1116, %v1115
    %v1118 = vsub.s32 4, %v1094
    %v1119 = vsel %vm996, %v1118, %v1094
    %v1120 = vsel %vm995, %v992, %v1117
    %v1121 = vsel %vm995, 0, %v1119
    %v1122 = vmul.f32 %v1120, %v1120
    %v1123 = vmul.f32 %v1122, -0.001358992
    %v1124 = vadd.f32 %v1123, 0.041655596
    %v1125 = vmul.f32 %v1122, %v1124
    %v1126 = vadd.f32 %v1125, -0.4999988
    %v1127 = vmul.f32 %v1122, %v1126
    %v1128 = vadd.f32 1.0, %v1127
    %v1129 = vmul.f32 %v1120, %v1120
    %v1130 = vmul.f32 %v1129, -0.00019511016
    %v1131 = vadd.f32 %v1130, 0.008332121
    %v1132 = vmul.f32 %v1129, %v1131
    %v1133 = vadd.f32 %v1132, -0.16666654
    %v1134 = vmul.f32 %v1129, %v1133
    %v1135 = vadd.f32 %v1134, 1.0
    %v1136 = vmul.f32 %v1135, %v1120
    %vm1137 = vweird.f32 %v992
    %v1138 = vand.u32 %v1121, 3
    %vm1139 = vcmp.lt.s32.totalorder %v1138, 2
    %vm1140 = vcmp.eq.s32.totalorder %v1138, 0
    %v1141 = vxor.u32 %v1136, 2147483648
    %v1142 = vsel %vm1140, %v1128, %v1141
    %vm1143 = vcmp.eq.s32.totalorder %v1138, 2
    %v1144 = vxor.u32 %v1128, 2147483648
    %v1145 = vsel %vm1143, %v1144, %v1136
    %v1146 = vsel %vm1139, %v1142, %v1145
    %v1147 = vsel %vm1137, nan, %v1146
    %v1148 = vand.u32 2147483647, %v993
    %vm1149 = vcmp.le.f32.partialorder %v1148, 0.7853982
    %vm1150 = vcmp.lt.s32.totalorder %v993, 0
    %v1151 = vand.u32 %v993, 2139095040
    %v1152 = vshrl.u32 %v1151, 23
    %v1153 = vsub.s32 %v1152, 127
    %v1154 = vand.u32 2147483647, %v993
    %v1155 = vand.u32 %v1154, 8388607
    %v1156 = vor.u32 %v1155, 8388608
    %v1157 = vsub.s32 0, %v1156
    %v1158 = vadd.s32 %v1153, 1
    %vm1159 = vcmp.gt.s32.totalorder %v1158, 0
    %v1160 = vsel %vm1159, %v1158, 0
    %v1161 = vshrl.u32 %v1160, 5
    %v1162 = vand.u32 %v1160, 31
    %v1163 = vsub.s32 32, %v1162
    %v1164 = vshrl.u32 683565275, %v1163
    %v1165 = vshll.u32 683565275, %v1162
    %v1166 = vshrl.u32 2475754826, %v1163
    %v1167 = vor.u32 %v1165, %v1166
    %v1168 = vshll.u32 2475754826, %v1162
    %v1169 = vshrl.u32 2131351028, %v1163
    %v1170 = vor.u32 %v1168, %v1169
    %v1171 = vshll.u32 2131351028, %v1162
    %v1172 = vshrl.u32 2102212464, %v1163
    %v1173 = vor.u32 %v1171, %v1172
    %v1174 = vshll.u32 2102212464, %v1162
    %v1175 = vshrl.u32 920167782, %v1163
    %v1176 = vor.u32 %v1174, %v1175
    %v1177 = vshll.u32 920167782, %v1162
    %v1178 = vshrl.u32 1326507024, %v1163
    %v1179 = vor.u32 %v1177, %v1178
    %vm1180 = vcmp.lt.s32.totalorder %v1161, 1
    %vm1181 = vcmp.lt.s32.totalorder %v1161, 2
    %vm1182 = vcmp.lt.s32.totalorder %v1161, 3
    %vm1183 = vcmp.lt.s32.totalorder %v1161, 4
    %v1184 = vsel %vm1180, %v1164, %v1167
    %v1185 = vsel %vm1183, %v1173, 2102212464
    %v1186 = vsel %vm1182, %v1170, %v1185
    %v1187 = vsel %vm1181, %v1184, %v1186
    %v1188 = vsel %vm1180, %v1167, %v1170
    %v1189 = vsel %vm1183, %v1176, 920167782
    %v1190 = vsel %vm1182, %v1173, %v1189
    %v1191 = vsel %vm1181, %v1188, %v1190
    %v1192 = vsel %vm1180, %v1170, %v1173
    %v1193 = vsel %vm1183, %v1179, 1326507024
    %v1194 = vsel %vm1182, %v1176, %v1193
    %v1195 = vsel %vm1181, %v1192, %v1194
    %v1196 = vshll.u32 %v1156, 8
    %v1197 = vand.u32 %v1196, 65535
    %v1198 = vshrl.u32 %v1196, 16
    %v1199 = vand.u32 %v1195, 65535
    %v1200 = vshrl.u32 %v1195, 16
    %v1201 = vmul.u32 %v1197, %v1199
    %v1202 = vmul.u32 %v1197, %v1200
    %v1203 = vmul.u32 %v1198, %v1199
    %v1204 = vmul.u32 %v1198, %v1200
    %v1205 = vshll.u32 %v1202, 16
    %v1206 = vshrl.u32 %v1202, 16
    %v1207 = vshll.u32 %v1203, 16
    %v1208 = vshrl.u32 %v1203, 16
    %vm1209 = vc.u32 %v1201, %v1205
    %v1210 = vsel %vm1209, 1, 0
    %v1211 = vadd.s32 %v1201, %v1205
    %v1212 = vadd.s32 %v1204, %v1210
    %vm1213 = vc.u32 %v1211, %v1207
    %v1214 = vsel %vm1213, 1, 0
    %v1215 = vadd.s32 %v1211, %v1207
    %v1216 = vadd.s32 %v1212, %v1214
    %v1217 = vadd.s32 %v1216, %v1206
    %v1218 = vadd.s32 %v1217, %v1208
    %v1219 = vand.u32 %v1196, 65535
    %v1220 = vshrl.u32 %v1196, 16
    %v1221 = vand.u32 %v1191, 65535
    %v1222 = vshrl.u32 %v1191, 16
    %v1223 = vmul.u32 %v1219, %v1221
    %v1224 = vmul.u32 %v1219, %v1222
    %v1225 = vmul.u32 %v1220, %v1221
    %v1226 = vmul.u32 %v1220, %v1222
    %v1227 = vshll.u32 %v1224, 16
    %v1228 = vshrl.u32 %v1224, 16
    %v1229 = vshll.u32 %v1225, 16
    %v1230 = vshrl.u32 %v1225, 16
    %vm1231 = vc.u32 %v1223, %v1227
    %v1232 = vsel %vm1231, 1, 0
    %v1233 = vadd.s32 %v1223, %v1227
    %v1234 = vadd.s32 %v1226, %v1232
    %vm1235 = vc.u32 %v1233, %v1229
    %v1236 = vsel %vm1235, 1, 0
    %v1237 = vadd.s32 %v1233, %v1229
    %v1238 = vadd.s32 %v1234, %v1236
    %v1239 = vadd.s32 %v1238, %v1228
    %v1240 = vadd.s32 %v1239, %v1230
    %v1241 = vmul.u32 %v1196, %v1187
    %v1242 = vadd.s32 %v1218, %v1237
    %vm1243 = vc.u32 %v1218, %v1237
    %v1244 = vadd.s32 %v1240, 1
    %v1245 = vsel %vm1243, %v1244, %v1240
    %v1246 = vadd.s32 %v1241, %v1245
    %v1247 = vadd.s32 %v1246, 536870912
    %v1248 = vshrl.u32 %v1247, 30
    %v1249 = vshll.u32 %v1248, 30
    %v1250 = vsub.s32 %v1246, %v1249
    %vm1251 = vcmp.lt.s32.totalorder %v1250, 0
    %v1252 = vsub.s32 0, %v1250
    %v1253 = vsel %vm1251, %v1252, %v1250
    %v1254 = vclz %v1253
    %v1255 = vsub.s32 %v1254, 2
    %vm1256 = vcmp.gt.s32.totalorder 0, %v1255
    %v1257 = vsel %vm1256, 0, %v1255
    %v1258 = vsub.s32 32, %v1257
    %v1259 = vshll.u32 %v1250, %v1257
    %v1260 = vshrl.u32 %v1242, %v1258
    %v1261 = vor.u32 %v1259, %v1260
    %v1262 = vsub.s32 4294967266, %v1257
    %v1263 = vadd.s32 %v1262, 127
    %v1264 = vshll.u32 %v1263, 23
    %v1265 = vor.u32 4788187, %v1264
    %v1266 = vand.u32 2147483647, %v1265
    %v1268 = vcvt.s32.f32 %v1261
    %v1269 = vmul.f32 %v1268, %v1266
    %v1270 = vxor.u32 %v1269, 2147483648
    %v1271 = vsel %vm1150, %v1270, %v1269
    %v1272 = vsub.s32 4, %v1248
    %v1273 = vsel %vm1150, %v1272, %v1248
    %v1274 = vsel %vm1149, %v993, %v1271
    %v1275 = vsel %vm1149, 0, %v1273
    %v1276 = vmul.f32 %v1274, %v1274
    %v1277 = vmul.f32 %v1276, -0.001358992
    %v1278 = vadd.f32 %v1277, 0.041655596
    %v1279 = vmul.f32 %v1276, %v1278
    %v1280 = vadd.f32 %v1279, -0.4999988
    %v1281 = vmul.f32 %v1276, %v1280
    %v1282 = vadd.f32 1.0, %v1281
    %v1283 = vmul.f32 %v1274, %v1274
    %v1284 = vmul.f32 %v1283, -0.00019511016
    %v1285 = vadd.f32 %v1284, 0.008332121
    %v1286 = vmul.f32 %v1283, %v1285
    %v1287 = vadd.f32 %v1286, -0.16666654
    %v1288 = vmul.f32 %v1283, %v1287
    %v1289 = vadd.f32 %v1288, 1.0
    %v1290 = vmul.f32 %v1289, %v1274
    %vm1291 = vweird.f32 %v993
    %v1292 = vand.u32 %v1275, 3
    %vm1293 = vcmp.lt.s32.totalorder %v1292, 2
    %vm1294 = vcmp.eq.s32.totalorder %v1292, 0
    %v1295 = vxor.u32 %v1290, 2147483648
    %v1296 = vsel %vm1294, %v1282, %v1295
    %vm1297 = vcmp.eq.s32.totalorder %v1292, 2
    %v1298 = vxor.u32 %v1282, 2147483648
    %v1299 = vsel %vm1297, %v1298, %v1290
    %v1300 = vsel %vm1293, %v1296, %v1299
    %v1301 = vsel %vm1291, nan, %v1300
    %v1302 = vmul.f32 %v938, %v1147
    %v1303 = vmul.f32 %v940, %v1301
    %v1304 = vmul.f32 %v1302, 0.1
    %v1305 = vmul.f32 %v1303, 0.1
    %v1306 = vand.u32 2147483647, %v992
    %vm1307 = vcmp.le.f32.partialorder %v1306, 0.7853982
    %vm1308 = vcmp.lt.s32.totalorder %v992, 0
    %v1309 = vand.u32 %v992, 2139095040
    %v1310 = vshrl.u32 %v1309, 23
    %v1311 = vsub.s32 %v1310, 127
    %v1312 = vand.u32 2147483647, %v992
    %v1313 = vand.u32 %v1312, 8388607
    %v1314 = vor.u32 %v1313, 8388608
    %v1315 = vsub.s32 0, %v1314
    %v1316 = vadd.s32 %v1311, 1
    %vm1317 = vcmp.gt.s32.totalorder %v1316, 0
    %v1318 = vsel %vm1317, %v1316, 0
    %v1319 = vshrl.u32 %v1318, 5
    %v1320 = vand.u32 %v1318, 31
    %v1321 = vsub.s32 32, %v1320
    %v1322 = vshrl.u32 683565275, %v1321
    %v1323 = vshll.u32 683565275, %v1320
    %v1324 = vshrl.u32 2475754826, %v1321
    %v1325 = vor.u32 %v1323, %v1324
    %v1326 = vshll.u32 2475754826, %v1320
    %v1327 = vshrl.u32 2131351028, %v1321
    %v1328 = vor.u32 %v1326, %v1327
    %v1329 = vshll.u32 2131351028, %v1320
    %v1330 = vshrl.u32 2102212464, %v1321
    %v1331 = vor.u32 %v1329, %v1330
    %v1332 = vshll.u32 2102212464, %v1320
    %v1333 = vshrl.u32 920167782, %v1321
    %v1334 = vor.u32 %v1332, %v1333
    %v1335 = vshll.u32 920167782, %v1320
    %v1336 = vshrl.u32 1326507024, %v1321
    %v1337 = vor.u32 %v1335, %v1336
    %vm1338 = vcmp.lt.s32.totalorder %v1319, 1
    %vm1339 = vcmp.lt.s32.totalorder %v1319, 2
    %vm1340 = vcmp.lt.s32.totalorder %v1319, 3
    %vm1341 = vcmp.lt.s32.totalorder %v1319, 4
    %v1342 = vsel %vm1338, %v1322, %v1325
    %v1343 = vsel %vm1341, %v1331, 2102212464
    %v1344 = vsel %vm1340, %v1328, %v1343
    %v1345 = vsel %vm1339, %v1342, %v1344
    %v1346 = vsel %vm1338, %v1325, %v1328
    %v1347 = vsel %vm1341, %v1334, 920167782
    %v1348 = vsel %vm1340, %v1331, %v1347
    %v1349 = vsel %vm1339, %v1346, %v1348
    %v1350 = vsel %vm1338, %v1328, %v1331
    %v1351 = vsel %vm1341, %v1337, 1326507024
    %v1352 = vsel %vm1340, %v1334, %v1351
    %v1353 = vsel %vm1339, %v1350, %v1352
    %v1354 = vshll.u32 %v1314, 8
    %v1355 = vand.u32 %v1354, 65535
    %v1356 = vshrl.u32 %v1354, 16
    %v1357 = vand.u32 %v1353, 65535
    %v1358 = vshrl.u32 %v1353, 16
    %v1359 = vmul.u32 %v1355, %v1357
    %v1360 = vmul.u32 %v1355, %v1358
    %v1361 = vmul.u32 %v1356, %v1357
    %v1362 = vmul.u32 %v1356, %v1358
    %v1363 = vshll.u32 %v1360, 16
    %v1364 = vshrl.u32 %v1360, 16
    %v1365 = vshll.u32 %v1361, 16
    %v1366 = vshrl.u32 %v1361, 16
    %vm1367 = vc.u32 %v1359, %v1363
    %v1368 = vsel %vm1367, 1, 0
    %v1369 = vadd.s32 %v1359, %v1363
    %v1370 = vadd.s32 %v1362, %v1368
    %vm1371 = vc.u32 %v1369, %v1365
    %v1372 = vsel %vm1371, 1, 0
    %v1373 = vadd.s32 %v1369, %v1365
    %v1374 = vadd.s32 %v1370, %v1372
    %v1375 = vadd.s32 %v1374, %v1364
    %v1376 = vadd.s32 %v1375, %v1366
    %v1377 = vand.u32 %v1354, 65535
    %v1378 = vshrl.u32 %v1354, 16
    %v1379 = vand.u32 %v1349, 65535
    %v1380 = vshrl.u32 %v1349, 16
    %v1381 = vmul.u32 %v1377, %v1379
    %v1382 = vmul.u32 %v1377, %v1380
    %v1383 = vmul.u32 %v1378, %v1379
    %v1384 = vmul.u32 %v1378, %v1380
    %v1385 = vshll.u32 %v1382, 16
    %v1386 = vshrl.u32 %v1382, 16
    %v1387 = vshll.u32 %v1383, 16
    %v1388 = vshrl.u32 %v1383, 16
    %vm1389 = vc.u32 %v1381, %v1385
    %v1390 = vsel %vm1389, 1, 0
    %v1391 = vadd.s32 %v1381, %v1385
    %v1392 = vadd.s32 %v1384, %v1390
    %vm1393 = vc.u32 %v1391, %v1387
    %v1394 = vsel %vm1393, 1, 0
    %v1395 = vadd.s32 %v1391, %v1387
    %v1396 = vadd.s32 %v1392, %v1394
    %v1397 = vadd.s32 %v1396, %v1386
    %v1398 = vadd.s32 %v1397, %v1388
    %v1399 = vmul.u32 %v1354, %v1345
    %v1400 = vadd.s32 %v1376, %v1395
    %vm1401 = vc.u32 %v1376, %v1395
    %v1402 = vadd.s32 %v1398, 1
    %v1403 = vsel %vm1401, %v1402, %v1398
    %v1404 = vadd.s32 %v1399, %v1403
    %v1405 = vadd.s32 %v1404, 536870912
    %v1406 = vshrl.u32 %v1405, 30
    %v1407 = vshll.u32 %v1406, 30
    %v1408 = vsub.s32 %v1404, %v1407
    %vm1409 = vcmp.lt.s32.totalorder %v1408, 0
    %v1410 = vsub.s32 0, %v1408
    %v1411 = vsel %vm1409, %v1410, %v1408
    %v1412 = vclz %v1411
    %v1413 = vsub.s32 %v1412, 2
    %vm1414 = vcmp.gt.s32.totalorder 0, %v1413
    %v1415 = vsel %vm1414, 0, %v1413
    %v1416 = vsub.s32 32, %v1415
    %v1417 = vshll.u32 %v1408, %v1415
    %v1418 = vshrl.u32 %v1400, %v1416
    %v1419 = vor.u32 %v1417, %v1418
    %v1420 = vsub.s32 4294967266, %v1415
    %v1421 = vadd.s32 %v1420, 127
    %v1422 = vshll.u32 %v1421, 23
    %v1423 = vor.u32 4788187, %v1422
    %v1424 = vand.u32 2147483647, %v1423
    %v1426 = vcvt.s32.f32 %v1419
    %v1427 = vmul.f32 %v1426, %v1424
    %v1428 = vxor.u32 %v1427, 2147483648
    %v1429 = vsel %vm1308, %v1428, %v1427
    %v1430 = vsub.s32 4, %v1406
    %v1431 = vsel %vm1308, %v1430, %v1406
    %v1432 = vsel %vm1307, %v992, %v1429
    %v1433 = vsel %vm1307, 0, %v1431
    %v1434 = vmul.f32 %v1432, %v1432
    %v1435 = vmul.f32 %v1434, -0.001358992
    %v1436 = vadd.f32 %v1435, 0.041655596
    %v1437 = vmul.f32 %v1434, %v1436
    %v1438 = vadd.f32 %v1437, -0.4999988
    %v1439 = vmul.f32 %v1434, %v1438
    %v1440 = vadd.f32 1.0, %v1439
    %v1441 = vmul.f32 %v1432, %v1432
    %v1442 = vmul.f32 %v1441, -0.00019511016
    %v1443 = vadd.f32 %v1442, 0.008332121
    %v1444 = vmul.f32 %v1441, %v1443
    %v1445 = vadd.f32 %v1444, -0.16666654
    %v1446 = vmul.f32 %v1441, %v1445
    %v1447 = vadd.f32 %v1446, 1.0
    %v1448 = vmul.f32 %v1447, %v1432
    %vm1449 = vweird.f32 %v992
    %v1450 = vadd.s32 %v1433, 3
    %v1451 = vand.u32 %v1450, 3
    %vm1452 = vcmp.lt.s32.totalorder %v1451, 2
    %vm1453 = vcmp.eq.s32.totalorder %v1451, 0
    %v1454 = vxor.u32 %v1448, 2147483648
    %v1455 = vsel %vm1453, %v1440, %v1454
    %vm1456 = vcmp.eq.s32.totalorder %v1451, 2
    %v1457 = vxor.u32 %v1440, 2147483648
    %v1458 = vsel %vm1456, %v1457, %v1448
    %v1459 = vsel %vm1452, %v1455, %v1458
    %v1460 = vsel %vm1449, nan, %v1459
    %v1461 = vand.u32 2147483647, %v993
    %vm1462 = vcmp.le.f32.partialorder %v1461, 0.7853982
    %vm1463 = vcmp.lt.s32.totalorder %v993, 0
    %v1464 = vand.u32 %v993, 2139095040
    %v1465 = vshrl.u32 %v1464, 23
    %v1466 = vsub.s32 %v1465, 127
    %v1467 = vand.u32 2147483647, %v993
    %v1468 = vand.u32 %v1467, 8388607
    %v1469 = vor.u32 %v1468, 8388608
    %v1470 = vsub.s32 0, %v1469
    %v1471 = vadd.s32 %v1466, 1
    %vm1472 = vcmp.gt.s32.totalorder %v1471, 0
    %v1473 = vsel %vm1472, %v1471, 0
    %v1474 = vshrl.u32 %v1473, 5
    %v1475 = vand.u32 %v1473, 31
    %v1476 = vsub.s32 32, %v1475
    %v1477 = vshrl.u32 683565275, %v1476
    %v1478 = vshll.u32 683565275, %v1475
    %v1479 = vshrl.u32 2475754826, %v1476
    %v1480 = vor.u32 %v1478, %v1479
    %v1481 = vshll.u32 2475754826, %v1475
    %v1482 = vshrl.u32 2131351028, %v1476
    %v1483 = vor.u32 %v1481, %v1482
    %v1484 = vshll.u32 2131351028, %v1475
    %v1485 = vshrl.u32 2102212464, %v1476
    %v1486 = vor.u32 %v1484, %v1485
    %v1487 = vshll.u32 2102212464, %v1475
    %v1488 = vshrl.u32 920167782, %v1476
    %v1489 = vor.u32 %v1487, %v1488
    %v1490 = vshll.u32 920167782, %v1475
    %v1491 = vshrl.u32 1326507024, %v1476
    %v1492 = vor.u32 %v1490, %v1491
    %vm1493 = vcmp.lt.s32.totalorder %v1474, 1
    %vm1494 = vcmp.lt.s32.totalorder %v1474, 2
    %vm1495 = vcmp.lt.s32.totalorder %v1474, 3
    %vm1496 = vcmp.lt.s32.totalorder %v1474, 4
    %v1497 = vsel %vm1493, %v1477, %v1480
    %v1498 = vsel %vm1496, %v1486, 2102212464
    %v1499 = vsel %vm1495, %v1483, %v1498
    %v1500 = vsel %vm1494, %v1497, %v1499
    %v1501 = vsel %vm1493, %v1480, %v1483
    %v1502 = vsel %vm1496, %v1489, 920167782
    %v1503 = vsel %vm1495, %v1486, %v1502
    %v1504 = vsel %vm1494, %v1501, %v1503
    %v1505 = vsel %vm1493, %v1483, %v1486
    %v1506 = vsel %vm1496, %v1492, 1326507024
    %v1507 = vsel %vm1495, %v1489, %v1506
    %v1508 = vsel %vm1494, %v1505, %v1507
    %v1509 = vshll.u32 %v1469, 8
    %v1510 = vand.u32 %v1509, 65535
    %v1511 = vshrl.u32 %v1509, 16
    %v1512 = vand.u32 %v1508, 65535
    %v1513 = vshrl.u32 %v1508, 16
    %v1514 = vmul.u32 %v1510, %v1512
    %v1515 = vmul.u32 %v1510, %v1513
    %v1516 = vmul.u32 %v1511, %v1512
    %v1517 = vmul.u32 %v1511, %v1513
    %v1518 = vshll.u32 %v1515, 16
    %v1519 = vshrl.u32 %v1515, 16
    %v1520 = vshll.u32 %v1516, 16
    %v1521 = vshrl.u32 %v1516, 16
    %vm1522 = vc.u32 %v1514, %v1518
    %v1523 = vsel %vm1522, 1, 0
    %v1524 = vadd.s32 %v1514, %v1518
    %v1525 = vadd.s32 %v1517, %v1523
    %vm1526 = vc.u32 %v1524, %v1520
    %v1527 = vsel %vm1526, 1, 0
    %v1528 = vadd.s32 %v1524, %v1520
    %v1529 = vadd.s32 %v1525, %v1527
    %v1530 = vadd.s32 %v1529, %v1519
    %v1531 = vadd.s32 %v1530, %v1521
    %v1532 = vand.u32 %v1509, 65535
    %v1533 = vshrl.u32 %v1509, 16
    %v1534 = vand.u32 %v1504, 65535
    %v1535 = vshrl.u32 %v1504, 16
    %v1536 = vmul.u32 %v1532, %v1534
    %v1537 = vmul.u32 %v1532, %v1535
    %v1538 = vmul.u32 %v1533, %v1534
    %v1539 = vmul.u32 %v1533, %v1535
    %v1540 = vshll.u32 %v1537, 16
    %v1541 = vshrl.u32 %v1537, 16
    %v1542 = vshll.u32 %v1538, 16
    %v1543 = vshrl.u32 %v1538, 16
    %vm1544 = vc.u32 %v1536, %v1540
    %v1545 = vsel %vm1544, 1, 0
    %v1546 = vadd.s32 %v1536, %v1540
    %v1547 = vadd.s32 %v1539, %v1545
    %vm1548 = vc.u32 %v1546, %v1542
    %v1549 = vsel %vm1548, 1, 0
    %v1550 = vadd.s32 %v1546, %v1542
    %v1551 = vadd.s32 %v1547, %v1549
    %v1552 = vadd.s32 %v1551, %v1541
    %v1553 = vadd.s32 %v1552, %v1543
    %v1554 = vmul.u32 %v1509, %v1500
    %v1555 = vadd.s32 %v1531, %v1550
    %vm1556 = vc.u32 %v1531, %v1550
    %v1557 = vadd.s32 %v1553, 1
    %v1558 = vsel %vm1556, %v1557, %v1553
    %v1559 = vadd.s32 %v1554, %v1558
    %v1560 = vadd.s32 %v1559, 536870912
    %v1561 = vshrl.u32 %v1560, 30
    %v1562 = vshll.u32 %v1561, 30
    %v1563 = vsub.s32 %v1559, %v1562
    %vm1564 = vcmp.lt.s32.totalorder %v1563, 0
    %v1565 = vsub.s32 0, %v1563
    %v1566 = vsel %vm1564, %v1565, %v1563
    %v1567 = vclz %v1566
    %v1568 = vsub.s32 %v1567, 2
    %vm1569 = vcmp.gt.s32.totalorder 0, %v1568
    %v1570 = vsel %vm1569, 0, %v1568
    %v1571 = vsub.s32 32, %v1570
    %v1572 = vshll.u32 %v1563, %v1570
    %v1573 = vshrl.u32 %v1555, %v1571
    %v1574 = vor.u32 %v1572, %v1573
    %v1575 = vsub.s32 4294967266, %v1570
    %v1576 = vadd.s32 %v1575, 127
    %v1577 = vshll.u32 %v1576, 23
    %v1578 = vor.u32 4788187, %v1577
    %v1579 = vand.u32 2147483647, %v1578
    %v1581 = vcvt.s32.f32 %v1574
    %v1582 = vmul.f32 %v1581, %v1579
    %v1583 = vxor.u32 %v1582, 2147483648
    %v1584 = vsel %vm1463, %v1583, %v1582
    %v1585 = vsub.s32 4, %v1561
    %v1586 = vsel %vm1463, %v1585, %v1561
    %v1587 = vsel %vm1462, %v993, %v1584
    %v1588 = vsel %vm1462, 0, %v1586
    %v1589 = vmul.f32 %v1587, %v1587
    %v1590 = vmul.f32 %v1589, -0.001358992
    %v1591 = vadd.f32 %v1590, 0.041655596
    %v1592 = vmul.f32 %v1589, %v1591
    %v1593 = vadd.f32 %v1592, -0.4999988
    %v1594 = vmul.f32 %v1589, %v1593
    %v1595 = vadd.f32 1.0, %v1594
    %v1596 = vmul.f32 %v1587, %v1587
    %v1597 = vmul.f32 %v1596, -0.00019511016
    %v1598 = vadd.f32 %v1597, 0.008332121
    %v1599 = vmul.f32 %v1596, %v1598
    %v1600 = vadd.f32 %v1599, -0.16666654
    %v1601 = vmul.f32 %v1596, %v1600
    %v1602 = vadd.f32 %v1601, 1.0
    %v1603 = vmul.f32 %v1602, %v1587
    %vm1604 = vweird.f32 %v993
    %v1605 = vadd.s32 %v1588, 3
    %v1606 = vand.u32 %v1605, 3
    %vm1607 = vcmp.lt.s32.totalorder %v1606, 2
    %vm1608 = vcmp.eq.s32.totalorder %v1606, 0
    %v1609 = vxor.u32 %v1603, 2147483648
    %v1610 = vsel %vm1608, %v1595, %v1609
    %vm1611 = vcmp.eq.s32.totalorder %v1606, 2
    %v1612 = vxor.u32 %v1595, 2147483648
    %v1613 = vsel %vm1611, %v1612, %v1603
    %v1614 = vsel %vm1607, %v1610, %v1613
    %v1615 = vsel %vm1604, nan, %v1614
    %v1616 = vmul.f32 %v938, %v1460
    %v1617 = vmul.f32 %v940, %v1615
    %v1618 = vmul.f32 %v1616, 0.1
    %v1619 = vmul.f32 %v1617, 0.1
    %1622 = vrot.lane.b32.xlu0 %v1618, 1
    %v1623 = vpop.permute.xlu0 %1622
    %1624 = vrot.lane.b32.xlu0 %v1619, 1
    %v1625 = vpop.permute.xlu0 %1624
    %v1628 = vsel %vm945, %v1304, %v1623
    %v1629 = vsel %vm945, %v1305, %v1625
    %v1632 = vrot.slane %v1628, 7
    %v1633 = vrot.slane %v1629, 7
    %v1634 = vsel %vm98, %v1632, %v1633
    %v1637 = vsel %vm98, 0.0, %v1632
    %v1638 = vadd.f32 %v1628, %v1637
    %v1639 = vadd.f32 %v1629, %v1634
    %v1642 = vrot.slane %v1638, 6
    %v1643 = vrot.slane %v1639, 6
    %v1644 = vsel %vm109, %v1642, %v1643
    %v1647 = vsel %vm109, 0.0, %v1642
    %v1648 = vadd.f32 %v1638, %v1647
    %v1649 = vadd.f32 %v1639, %v1644
    %v1652 = vrot.slane %v1648, 4
    %v1653 = vrot.slane %v1649, 4
    %v1654 = vsel %vm120, %v1652, %v1653
    %v1657 = vsel %vm120, 0.0, %v1652
    %v1658 = vadd.f32 %v1648, %v1657
    %v1659 = vadd.f32 %v1649, %v1654
    %v1660 = vadd.f32 %v1658, 0.0
    %v1661 = vadd.f32 %v1659, %v1658
    %v1662 = vsel %vm945, %v840, %v851
    %vm1663 = vcmask 15360
    %v1664 = vsel %vm1663, %v1662, %v139
    %v1665 = vadd.f32 %v840, %v1660
    %v1666 = vadd.f32 %v840, %v1661
    %v1667 = vadd.f32 %v851, %v1660
    %v1668 = vadd.f32 %v851, %v1661
    %v1669 = vadd.f32 %v139, %v982
    %v1670 = vadd.f32 %v139, %v983
    %1673 = vrot.lane.b32.xlu0 %v1669, 2
    %v1674 = vpop.permute.xlu0 %1673
    %1675 = vrot.lane.b32.xlu0 %v1670, 2
    %v1676 = vpop.permute.xlu0 %1675
    %v1679 = vsel %vm945, %v1665, %v1667
    %v1680 = vsel %vm945, %v1666, %v1668
    %v1681 = vsel %vm1663, %v1679, %v1674
    %v1682 = vsel %vm1663, %v1680, %v1676
    %v1685 = vrot.slane %v1681, 7
    %v1686 = vrot.slane %v1682, 7
    %v1687 = vsel %vm98, %v1685, %v1686
    %v1691 = vsel %vm98, %v1664, %v1685
    %vm1692 = vcmask 23552
    %1693 = vst.msk [vmem:[%s5] sm:$0xff] %vm1692, %v1691
    %1694 = vst.msk [vmem:[%s5 + $0x8] sm:$0xff] %vm1692, %v1687
    %vm1695 = vcmask 16384
    %1696 = vst.msk [vmem:[%s5 + $0x10] sm:$0x1] %vm1695, %v1686
    // Predicated region
    $region22: #{tpu_custom_call.1} parent=1 // pred_check
      _
    $region23: #{tpu_custom_call.1} parent=1 // pred_check_branch
      %1698 = sbr.rel (0) target = $region25
    $region24: #{tpu_custom_call.1} parent=1 // pred_region
      _
    $region25: #{tpu_custom_call.1} parent=1 // pred_fallthru
      _
    // Predicated region
    $region26: #{tpu_custom_call.1} parent=1 // pred_check
      _
    $region27: #{tpu_custom_call.1} parent=1 // pred_check_branch
      %1700 = sbr.rel (0) target = $region29
    $region28: #{tpu_custom_call.1} parent=1 // pred_region
      _
    $region29: #{tpu_custom_call.1} parent=1 // pred_fallthru
      _
    // Predicated region
    $region30: #{tpu_custom_call.1} parent=1 // pred_check
      _
    $region31: #{tpu_custom_call.1} parent=1 // pred_check_branch
      %1702 = sbr.rel (0) target = $region33
    $region32: #{tpu_custom_call.1} parent=1 // pred_region
      %1704 = vsyncadd [#allocation3], 0
      %s1706 = sshll.u32 [#allocation5], 4
      %s1707 = int_to_ptr.vmem [resolvable:$true] %s1706
      %s1708 = sshll.u32 %s6, 4
      %s1709 = int_to_ptr.hbm [resolvable:$true] %s1708
      %1711 = dma.vmem_to_hbm [thread:$0]  %s1707, 16, %s1709, [#allocation3]
    $region33: #{tpu_custom_call.1} parent=1 // pred_fallthru
      _
    // Predicated region
    $region34: #{tpu_custom_call.1} parent=1 // pred_check
      _
    $region35: #{tpu_custom_call.1} parent=1 // pred_check_branch
      %1713 = sbr.rel (0) target = $region37
    $region36: #{tpu_custom_call.1} parent=1 // pred_region
      _
    $region37: #{tpu_custom_call.1} parent=1 // pred_fallthru
      _
    // Predicated region
    $region38: #{tpu_custom_call.1} parent=1 // pred_check
      _
    $region39: #{tpu_custom_call.1} parent=1 // pred_check_branch
      %1715 = sbr.rel (0) target = $region41
    $region40: #{tpu_custom_call.1} parent=1 // pred_region
      _
    $region41: #{tpu_custom_call.1} parent=1 // pred_fallthru
      _
    // Predicated region
    $region42: #{tpu_custom_call.1} parent=1 // pred_check
      _
    $region43: #{tpu_custom_call.1} parent=1 // pred_check_branch
      %1717 = sbr.rel (0) target = $region45
    $region44: #{tpu_custom_call.1} parent=1 // pred_region
      %1719 = dma.done [#allocation3], 16
    $region45: #{tpu_custom_call.1} parent=1 // pred_fallthru
      _
    %1720 = vsyncpa [#allocation3], 1
    %1721 = vsyncpa [#allocation4], 1

</llo_original>
